<compile_context>
chip_gen: v7x
topology: tpu7x:2x2x1
jax: 0.10.0
libtpu: 0.0.40
codegen_flags: <defaults>
</compile_context>

<pallas_src>
import functools

import jax
import jax.numpy as jnp
import numpy as np
from jax import lax
from jax.experimental import pallas as pl
from jax.experimental.pallas import tpu as pltpu


def _bottleneck_kernel(x_ref, w1_ref, w2_ref, w3_ref,
                       b1_ref, b2_ref, b3_ref, o_ref, *, width):
    # x_ref block: (1, H*W, Cin) bf16 ; o_ref block: (1, H*W, Cout) bf16
    _, HW, Cin = x_ref.shape
    P = w1_ref.shape[1]
    W = width

    x = x_ref[0]                                             # (HW, Cin) bf16

    # ---- conv1 (1x1, BN scale folded into w1) + bias + relu -----------------
    h1 = jnp.dot(x, w1_ref[...], preferred_element_type=jnp.float32)
    a1 = jnp.maximum(h1 + b1_ref[...], 0.0)                  # (HW, P) f32

    # ---- conv2 (3x3, stride 1, pad 1), BN scale folded ----------------------
    # Width im2col on the flat layout: left/right neighbour columns are
    # sublane rolls by +-1 (wrap across rows is masked away at the row edges),
    # fused on the lane axis -> (HW, 3P).  One matmul per kernel row (K=3P).
    idx = lax.broadcasted_iota(jnp.int32, (HW, P), 0)        # flat spatial index
    col = idx % W                                            # column within row
    left = jnp.where(col == 0, 0.0, pltpu.roll(a1, shift=1, axis=0))
    right = jnp.where(col == W - 1, 0.0, pltpu.roll(a1, shift=HW - 1, axis=0))
    im2 = jnp.concatenate(
        [left.astype(jnp.bfloat16),
         a1.astype(jnp.bfloat16),
         right.astype(jnp.bfloat16)], axis=-1)               # (HW, 3P) bf16

    r0 = jnp.dot(im2, w2_ref[0], preferred_element_type=jnp.float32)  # top row tap
    r1 = jnp.dot(im2, w2_ref[1], preferred_element_type=jnp.float32)  # center
    r2 = jnp.dot(im2, w2_ref[2], preferred_element_type=jnp.float32)  # bottom

    # Row taps: output row h needs r0 from row h-1 and r2 from row h+1.
    # Sublane rolls by +-W with first/last-row masks realise the H padding.
    up = jnp.where(idx < W, 0.0, pltpu.roll(r0, shift=W, axis=0))
    down = jnp.where(idx >= HW - W, 0.0, pltpu.roll(r2, shift=HW - W, axis=0))
    conv2 = r1 + up + down
    a2 = jnp.maximum(conv2 + b2_ref[...], 0.0)               # (HW, P) f32

    # ---- conv3 (1x1, BN scale folded) + bias ---------------------------------
    y = jnp.dot(a2.astype(jnp.bfloat16), w3_ref[...],
                preferred_element_type=jnp.float32) + b3_ref[...]

    # ---- residual add + relu (re-read resident input tile) -------------------
    out = jnp.maximum(y + x.astype(jnp.float32), 0.0)
    o_ref[0] = out.astype(o_ref.dtype)


def _fold_bn_into_weights(params):
    """Fold eval-mode BN scales into conv weights; cast matmul operands to bf16."""
    w1, w2, w3, s1, b1, s2, b2, s3, b3 = params
    P = w1.shape[1]
    w1f = (w1 * s1[None, :]).astype(jnp.bfloat16)                         # (Cin, P)
    # w2 is HWIO (3, 3, Pin, Pout) -> per kernel-row matrix (3, 3P, P) with
    # row index dx*P + pin, matching the [left | center | right] lane concat.
    w2f = (w2 * s2[None, None, None, :]).reshape(3, 3 * P, P).astype(jnp.bfloat16)
    w3f = (w3 * s3[None, :]).astype(jnp.bfloat16)                         # (P, Cout)
    return (w1f, w2f, w3f,
            b1.reshape(1, -1).astype(jnp.float32),
            b2.reshape(1, -1).astype(jnp.float32),
            b3.reshape(1, -1).astype(jnp.float32))


def bottleneck_nhwc(x_nhwc, kparams):
    """x_nhwc: (N, H, W, Cin).  Returns (N, H, W, Cout) in bf16."""
    w1f, w2f, w3f, b1, b2, b3 = kparams
    N, H, W, Cin = x_nhwc.shape
    Cout = w3f.shape[1]
    assert Cin == Cout, "identity residual requires inplanes == planes*4"

    HW = H * W
    x_flat = x_nhwc.astype(jnp.bfloat16).reshape(N, HW, Cin)  # free: contiguous
    full = lambda a: pl.BlockSpec(a.shape, lambda n: (0,) * a.ndim)

    out_flat = pl.pallas_call(
        functools.partial(_bottleneck_kernel, width=W),
        out_shape=jax.ShapeDtypeStruct((N, HW, Cout), jnp.bfloat16),
        grid_spec=pltpu.PrefetchScalarGridSpec(
            num_scalar_prefetch=0,
            grid=(N,),
            in_specs=[
                pl.BlockSpec((1, HW, Cin), lambda n: (n, 0, 0)),
                full(w1f), full(w2f), full(w3f),
                full(b1), full(b2), full(b3),
            ],
            out_specs=pl.BlockSpec((1, HW, Cout), lambda n: (n, 0, 0)),
        ),
        compiler_params=pltpu.CompilerParams(
            dimension_semantics=("parallel",),
            vmem_limit_bytes=32 * 1024 * 1024),
    )(x_flat, w1f, w2f, w3f, b1, b2, b3)
    return out_flat.reshape(N, H, W, Cout)


def bottleneck_pallas(x_nchw, params):
    """PyTorch-style NCHW adapter.  x_nchw: (N, Cin, H, W) f32 -> (N, Cout, H, W) bf16."""
    kparams = _fold_bn_into_weights(params)
    x_nhwc = jnp.transpose(x_nchw, (0, 2, 3, 1))      # boundary transpose only
    out_nhwc = bottleneck_nhwc(x_nhwc, kparams)
    return jnp.transpose(out_nhwc, (0, 3, 1, 2))


# ---------------------------------------------------------------------------
# Deterministic synthetic parameters (canonical f32, matmul/HWIO-ready).
# ---------------------------------------------------------------------------
def make_params(key, inplanes, planes):
    exp, eps = 4, 1e-5
    ks = jax.random.split(key, 6)

    w1 = jax.random.normal(ks[0], (inplanes, planes), jnp.float32) * 0.1        # (Cin, P)
    w2 = jax.random.normal(ks[1], (3, 3, planes, planes), jnp.float32) * 0.1    # HWIO
    w3 = jax.random.normal(ks[2], (planes, planes * exp), jnp.float32) * 0.1    # (P, Cout)

    def bn(k, c):
        kg, kb, km, kv = jax.random.split(k, 4)
        gamma = jax.random.uniform(kg, (c,), jnp.float32, 0.5, 1.5)
        beta = jax.random.normal(kb, (c,), jnp.float32) * 0.1
        mean = jax.random.normal(km, (c,), jnp.float32) * 0.1
        var = jax.random.uniform(kv, (c,), jnp.float32, 0.5, 1.5)
        scale = gamma / jnp.sqrt(var + eps)
        bias = beta - mean * scale
        return scale, bias

    s1, b1 = bn(ks[3], planes)
    s2, b2 = bn(ks[4], planes)
    s3, b3 = bn(ks[5], planes * exp)
    return (w1, w2, w3, s1, b1, s2, b2, s3, b3)


# ---------------------------------------------------------------------------
# Pure-JAX f32 reference (NHWC convs via lax) for verification.
# ---------------------------------------------------------------------------
def reference(x_nchw, params):
    w1, w2, w3, s1, b1, s2, b2, s3, b3 = params
    x = jnp.transpose(x_nchw, (0, 2, 3, 1))  # NHWC

    def conv(h, w_hwio, pad):
        return lax.conv_general_dilated(
            h, w_hwio, window_strides=(1, 1), padding=pad,
            dimension_numbers=("NHWC", "HWIO", "NHWC"))

    h = conv(x, w1.reshape(1, 1, *w1.shape), "VALID")
    h = jnp.maximum(h * s1 + b1, 0.0)
    h = conv(h, w2, [(1, 1), (1, 1)])
    h = jnp.maximum(h * s2 + b2, 0.0)
    h = conv(h, w3.reshape(1, 1, *w3.shape), "VALID")
    h = h * s3 + b3
    h = jnp.maximum(h + x, 0.0)
    return jnp.transpose(h, (0, 3, 1, 2))


if __name__ == "__main__":
    key = jax.random.PRNGKey(0)
    planes = 4
    inplanes = planes * 4          # identity residual path (downsample=None)
    N, H, W = 2, 16, 16

    kx, kp = jax.random.split(key)
    x = jax.random.normal(kx, (N, inplanes, H, W), jnp.float32)
    params = make_params(kp, inplanes, planes)

    out = jax.block_until_ready(bottleneck_pallas(x, params))
    ref = jax.block_until_ready(reference(x, params))

    # bf16 MXU inputs / bf16 output => compare with bf16-appropriate tolerance.
    np.testing.assert_allclose(np.asarray(out.astype(jnp.float32)),
                               np.asarray(ref), rtol=2e-2, atol=2e-2)
    print("KERNEL_OK")
</pallas_src>

<mosaic_0001>
module attributes {stable_mosaic.version = 11 : i64} {
  func.func @_bottleneck_kernel(%arg0: i32, %arg1: memref<1x256x16xbf16, #tpu.memory_space<vmem>>, %arg2: memref<16x4xbf16, #tpu.memory_space<vmem>>, %arg3: memref<3x12x4xbf16, #tpu.memory_space<vmem>>, %arg4: memref<4x16xbf16, #tpu.memory_space<vmem>>, %arg5: memref<1x4xf32, #tpu.memory_space<vmem>>, %arg6: memref<1x4xf32, #tpu.memory_space<vmem>>, %arg7: memref<1x16xf32, #tpu.memory_space<vmem>>, %arg8: memref<1x256x16xbf16, #tpu.memory_space<vmem>>) attributes {dimension_semantics = [#tpu.dimension_semantics<parallel>], iteration_bounds = array<i64: 2>, scalar_prefetch = 0 : i64, scratch_operands = 0 : i64, tpu.core_type = #tpu.core_type<tc>, window_params = [{transform_indices = @transform_0, window_bounds = array<i64: 1, 256, 16>}, {pipeline_mode = #tpu.pipeline_mode<synchronous>, transform_indices = @transform_1, window_bounds = array<i64: 16, 4>}, {pipeline_mode = #tpu.pipeline_mode<synchronous>, transform_indices = @transform_2, window_bounds = array<i64: 3, 12, 4>}, {pipeline_mode = #tpu.pipeline_mode<synchronous>, transform_indices = @transform_3, window_bounds = array<i64: 4, 16>}, {pipeline_mode = #tpu.pipeline_mode<synchronous>, transform_indices = @transform_4, window_bounds = array<i64: 1, 4>}, {pipeline_mode = #tpu.pipeline_mode<synchronous>, transform_indices = @transform_5, window_bounds = array<i64: 1, 4>}, {pipeline_mode = #tpu.pipeline_mode<synchronous>, transform_indices = @transform_6, window_bounds = array<i64: 1, 16>}, {transform_indices = @transform_7, window_bounds = array<i64: 1, 256, 16>}]} {
    %c0 = arith.constant 0 : index
    %c0_0 = arith.constant 0 : index
    %c0_1 = arith.constant 0 : index
    %0 = vector.load %arg1[%c0, %c0_0, %c0_1] : memref<1x256x16xbf16, #tpu.memory_space<vmem>>, vector<1x256x16xbf16>
    %1 = vector.shape_cast %0 : vector<1x256x16xbf16> to vector<256x16xbf16>
    %c0_2 = arith.constant 0 : index
    %c0_3 = arith.constant 0 : index
    %2 = vector.load %arg2[%c0_2, %c0_3] : memref<16x4xbf16, #tpu.memory_space<vmem>>, vector<16x4xbf16>
    %cst = arith.constant dense<0.000000e+00> : vector<256x4xf32>
    %3 = tpu.matmul %1, %2, %cst {dimension_numbers = #tpu.dot_dimension_numbers<[1], [0], [0], [1], [0, 0, 1, 1], [], []>} : vector<256x16xbf16>, vector<16x4xbf16>, vector<256x4xf32> -> vector<256x4xf32>
    %c0_4 = arith.constant 0 : index
    %c0_5 = arith.constant 0 : index
    %4 = vector.load %arg5[%c0_4, %c0_5] : memref<1x4xf32, #tpu.memory_space<vmem>>, vector<1x4xf32>
    %5 = vector.broadcast %4 : vector<1x4xf32> to vector<256x4xf32>
    %6 = arith.addf %3, %5 : vector<256x4xf32>
    %cst_6 = arith.constant 0.000000e+00 : f32
    %7 = vector.broadcast %cst_6 : f32 to vector<256x4xf32>
    %8 = arith.maximumf %6, %7 : vector<256x4xf32>
    %9 = tpu.iota {dimensions = array<i32: 0>} : vector<256x4xi32>
    %c16_i32 = arith.constant 16 : i32
    %c0_i32 = arith.constant 0 : i32
    %10 = arith.cmpi eq, %c16_i32, %c0_i32 : i32
    %c1_i32 = arith.constant 1 : i32
    %11 = arith.select %10, %c1_i32, %c16_i32 : i32
    %12 = vector.broadcast %11 : i32 to vector<256x4xi32>
    %13 = arith.remsi %9, %12 : vector<256x4xi32>
    %c0_i32_7 = arith.constant 0 : i32
    %14 = vector.broadcast %c0_i32_7 : i32 to vector<256x4xi32>
    %15 = arith.cmpi ne, %13, %14 : vector<256x4xi32>
    %c0_i32_8 = arith.constant 0 : i32
    %16 = vector.broadcast %c0_i32_8 : i32 to vector<256x4xi32>
    %17 = arith.cmpi slt, %13, %16 : vector<256x4xi32>
    %c0_i32_9 = arith.constant 0 : i32
    %18 = arith.cmpi slt, %11, %c0_i32_9 : i32
    %19 = vector.broadcast %18 : i1 to vector<256x4xi1>
    %20 = vector.broadcast %19 : vector<256x4xi1> to vector<256x4xi1>
    %21 = arith.xori %17, %20 : vector<256x4xi1>
    %22 = arith.andi %21, %15 : vector<256x4xi1>
    %23 = vector.broadcast %11 : i32 to vector<256x4xi32>
    %24 = arith.addi %13, %23 : vector<256x4xi32>
    %25 = arith.select %22, %24, %13 : vector<256x4xi1>, vector<256x4xi32>
    %c0_i32_10 = arith.constant 0 : i32
    %26 = vector.broadcast %c0_i32_10 : i32 to vector<256x4xi32>
    %27 = arith.cmpi eq, %25, %26 : vector<256x4xi32>
    %c1_i32_11 = arith.constant 1 : i32
    %28 = tpu.dynamic_rotate %8 by %c1_i32_11 dim 0 : vector<256x4xf32>, i32 -> vector<256x4xf32>
    %cst_12 = arith.constant 0.000000e+00 : f32
    %29 = vector.broadcast %cst_12 : f32 to vector<256x4xf32>
    %30 = arith.select %27, %29, %28 : vector<256x4xi1>, vector<256x4xf32>
    %c15_i32 = arith.constant 15 : i32
    %31 = vector.broadcast %c15_i32 : i32 to vector<256x4xi32>
    %32 = arith.cmpi eq, %25, %31 : vector<256x4xi32>
    %c255_i32 = arith.constant 255 : i32
    %33 = tpu.dynamic_rotate %8 by %c255_i32 dim 0 : vector<256x4xf32>, i32 -> vector<256x4xf32>
    %cst_13 = arith.constant 0.000000e+00 : f32
    %34 = vector.broadcast %cst_13 : f32 to vector<256x4xf32>
    %35 = arith.select %32, %34, %33 : vector<256x4xi1>, vector<256x4xf32>
    %36 = arith.truncf %30 : vector<256x4xf32> to vector<256x4xbf16>
    %37 = arith.truncf %8 : vector<256x4xf32> to vector<256x4xbf16>
    %38 = arith.truncf %35 : vector<256x4xf32> to vector<256x4xbf16>
    %39 = tpu.concatenate %36, %37, %38 in 1 : vector<256x4xbf16>, vector<256x4xbf16>, vector<256x4xbf16> -> vector<256x12xbf16>
    %c0_14 = arith.constant 0 : index
    %c0_15 = arith.constant 0 : index
    %c0_16 = arith.constant 0 : index
    %40 = vector.load %arg3[%c0_14, %c0_15, %c0_16] : memref<3x12x4xbf16, #tpu.memory_space<vmem>>, vector<1x12x4xbf16>
    %41 = vector.shape_cast %40 : vector<1x12x4xbf16> to vector<12x4xbf16>
    %cst_17 = arith.constant dense<0.000000e+00> : vector<256x4xf32>
    %42 = tpu.matmul %39, %41, %cst_17 {dimension_numbers = #tpu.dot_dimension_numbers<[1], [0], [0], [1], [0, 0, 1, 1], [], []>} : vector<256x12xbf16>, vector<12x4xbf16>, vector<256x4xf32> -> vector<256x4xf32>
    %c1 = arith.constant 1 : index
    %c0_18 = arith.constant 0 : index
    %c0_19 = arith.constant 0 : index
    %43 = vector.load %arg3[%c1, %c0_18, %c0_19] : memref<3x12x4xbf16, #tpu.memory_space<vmem>>, vector<1x12x4xbf16>
    %44 = vector.shape_cast %43 : vector<1x12x4xbf16> to vector<12x4xbf16>
    %cst_20 = arith.constant dense<0.000000e+00> : vector<256x4xf32>
    %45 = tpu.matmul %39, %44, %cst_20 {dimension_numbers = #tpu.dot_dimension_numbers<[1], [0], [0], [1], [0, 0, 1, 1], [], []>} : vector<256x12xbf16>, vector<12x4xbf16>, vector<256x4xf32> -> vector<256x4xf32>
    %c2 = arith.constant 2 : index
    %c0_21 = arith.constant 0 : index
    %c0_22 = arith.constant 0 : index
    %46 = vector.load %arg3[%c2, %c0_21, %c0_22] : memref<3x12x4xbf16, #tpu.memory_space<vmem>>, vector<1x12x4xbf16>
    %47 = vector.shape_cast %46 : vector<1x12x4xbf16> to vector<12x4xbf16>
    %cst_23 = arith.constant dense<0.000000e+00> : vector<256x4xf32>
    %48 = tpu.matmul %39, %47, %cst_23 {dimension_numbers = #tpu.dot_dimension_numbers<[1], [0], [0], [1], [0, 0, 1, 1], [], []>} : vector<256x12xbf16>, vector<12x4xbf16>, vector<256x4xf32> -> vector<256x4xf32>
    %c16_i32_24 = arith.constant 16 : i32
    %49 = vector.broadcast %c16_i32_24 : i32 to vector<256x4xi32>
    %50 = arith.cmpi slt, %9, %49 : vector<256x4xi32>
    %c16_i32_25 = arith.constant 16 : i32
    %51 = tpu.dynamic_rotate %42 by %c16_i32_25 dim 0 : vector<256x4xf32>, i32 -> vector<256x4xf32>
    %cst_26 = arith.constant 0.000000e+00 : f32
    %52 = vector.broadcast %cst_26 : f32 to vector<256x4xf32>
    %53 = arith.select %50, %52, %51 : vector<256x4xi1>, vector<256x4xf32>
    %c240_i32 = arith.constant 240 : i32
    %54 = vector.broadcast %c240_i32 : i32 to vector<256x4xi32>
    %55 = arith.cmpi sge, %9, %54 : vector<256x4xi32>
    %c240_i32_27 = arith.constant 240 : i32
    %56 = tpu.dynamic_rotate %48 by %c240_i32_27 dim 0 : vector<256x4xf32>, i32 -> vector<256x4xf32>
    %cst_28 = arith.constant 0.000000e+00 : f32
    %57 = vector.broadcast %cst_28 : f32 to vector<256x4xf32>
    %58 = arith.select %55, %57, %56 : vector<256x4xi1>, vector<256x4xf32>
    %59 = arith.addf %45, %53 : vector<256x4xf32>
    %60 = arith.addf %59, %58 : vector<256x4xf32>
    %c0_29 = arith.constant 0 : index
    %c0_30 = arith.constant 0 : index
    %61 = vector.load %arg6[%c0_29, %c0_30] : memref<1x4xf32, #tpu.memory_space<vmem>>, vector<1x4xf32>
    %62 = vector.broadcast %61 : vector<1x4xf32> to vector<256x4xf32>
    %63 = arith.addf %60, %62 : vector<256x4xf32>
    %cst_31 = arith.constant 0.000000e+00 : f32
    %64 = vector.broadcast %cst_31 : f32 to vector<256x4xf32>
    %65 = arith.maximumf %63, %64 : vector<256x4xf32>
    %66 = arith.truncf %65 : vector<256x4xf32> to vector<256x4xbf16>
    %c0_32 = arith.constant 0 : index
    %c0_33 = arith.constant 0 : index
    %67 = vector.load %arg4[%c0_32, %c0_33] : memref<4x16xbf16, #tpu.memory_space<vmem>>, vector<4x16xbf16>
    %cst_34 = arith.constant dense<0.000000e+00> : vector<256x16xf32>
    %68 = tpu.matmul %66, %67, %cst_34 {dimension_numbers = #tpu.dot_dimension_numbers<[1], [0], [0], [1], [0, 0, 1, 1], [], []>} : vector<256x4xbf16>, vector<4x16xbf16>, vector<256x16xf32> -> vector<256x16xf32>
    %c0_35 = arith.constant 0 : index
    %c0_36 = arith.constant 0 : index
    %69 = vector.load %arg7[%c0_35, %c0_36] : memref<1x16xf32, #tpu.memory_space<vmem>>, vector<1x16xf32>
    %70 = vector.broadcast %69 : vector<1x16xf32> to vector<256x16xf32>
    %71 = arith.addf %68, %70 : vector<256x16xf32>
    %72 = arith.extf %1 : vector<256x16xbf16> to vector<256x16xf32>
    %73 = arith.addf %71, %72 : vector<256x16xf32>
    %cst_37 = arith.constant 0.000000e+00 : f32
    %74 = vector.broadcast %cst_37 : f32 to vector<256x16xf32>
    %75 = arith.maximumf %73, %74 : vector<256x16xf32>
    %76 = arith.truncf %75 : vector<256x16xf32> to vector<256x16xbf16>
    %c0_38 = arith.constant 0 : index
    %c0_39 = arith.constant 0 : index
    %c0_40 = arith.constant 0 : index
    %77 = vector.load %arg8[%c0_38, %c0_39, %c0_40] : memref<1x256x16xbf16, #tpu.memory_space<vmem>>, vector<1x256x16xbf16>
    %78 = vector.shape_cast %77 : vector<1x256x16xbf16> to vector<256x16xbf16>
    %79 = vector.shape_cast %76 : vector<256x16xbf16> to vector<1x256x16xbf16>
    tpu.vector_store %arg8[%c0_38, %c0_39, %c0_40], %79 {strides = array<i32>} : memref<1x256x16xbf16, #tpu.memory_space<vmem>>, vector<1x256x16xbf16>,
    return
  }
  func.func @transform_0(%arg0: i32) -> (i32, i32, i32) {
    %c0_i32 = arith.constant 0 : i32
    %c0_i32_0 = arith.constant 0 : i32
    %c0_i32_1 = arith.constant 0 : i32
    return %arg0, %c0_i32, %c0_i32_0 : i32, i32, i32
  }
  func.func @transform_1(%arg0: i32) -> (i32, i32) {
    %c0_i32 = arith.constant 0 : i32
    %c0_i32_0 = arith.constant 0 : i32
    %c0_i32_1 = arith.constant 0 : i32
    return %c0_i32, %c0_i32_0 : i32, i32
  }
  func.func @transform_2(%arg0: i32) -> (i32, i32, i32) {
    %c0_i32 = arith.constant 0 : i32
    %c0_i32_0 = arith.constant 0 : i32
    %c0_i32_1 = arith.constant 0 : i32
    %c0_i32_2 = arith.constant 0 : i32
    return %c0_i32, %c0_i32_0, %c0_i32_1 : i32, i32, i32
  }
  func.func @transform_3(%arg0: i32) -> (i32, i32) {
    %c0_i32 = arith.constant 0 : i32
    %c0_i32_0 = arith.constant 0 : i32
    %c0_i32_1 = arith.constant 0 : i32
    return %c0_i32, %c0_i32_0 : i32, i32
  }
  func.func @transform_4(%arg0: i32) -> (i32, i32) {
    %c0_i32 = arith.constant 0 : i32
    %c0_i32_0 = arith.constant 0 : i32
    %c0_i32_1 = arith.constant 0 : i32
    return %c0_i32, %c0_i32_0 : i32, i32
  }
  func.func @transform_5(%arg0: i32) -> (i32, i32) {
    %c0_i32 = arith.constant 0 : i32
    %c0_i32_0 = arith.constant 0 : i32
    %c0_i32_1 = arith.constant 0 : i32
    return %c0_i32, %c0_i32_0 : i32, i32
  }
  func.func @transform_6(%arg0: i32) -> (i32, i32) {
    %c0_i32 = arith.constant 0 : i32
    %c0_i32_0 = arith.constant 0 : i32
    %c0_i32_1 = arith.constant 0 : i32
    return %c0_i32, %c0_i32_0 : i32, i32
  }
  func.func @transform_7(%arg0: i32) -> (i32, i32, i32) {
    %c0_i32 = arith.constant 0 : i32
    %c0_i32_0 = arith.constant 0 : i32
    %c0_i32_1 = arith.constant 0 : i32
    return %arg0, %c0_i32, %c0_i32_0 : i32, i32, i32
  }
}

</mosaic_0001>

<llo_original>
// kernel: tpu_custom_call.1
$region0: #{tpu_custom_call.1}
  #allocation0 [shape = 'u32[]', space=smem, size = 0x4, offset = 0x4, fixed_abs, tag = 'smem constant byte address 0x4 - core index']
  #allocation1 [shape = 'u32[144,128]{1,0:T(1,128)}', space=vmem, size = 0x12000, scoped, tag = 'internal scratch']
  %s0 = inlined_call_operand.vmem [shape: bf16[2,256,16], index: 0, kind: input, shape index: {}]
  %s1 = inlined_call_operand.vmem [shape: bf16[16,4], index: 1, kind: input, shape index: {}]
  %s2 = inlined_call_operand.vmem [shape: bf16[3,12,4], index: 2, kind: input, shape index: {}]
  %s3 = inlined_call_operand.vmem [shape: bf16[4,16], index: 3, kind: input, shape index: {}]
  %s4 = inlined_call_operand.vmem [shape: f32[1,4], index: 4, kind: input, shape index: {}]
  %s5 = inlined_call_operand.vmem [shape: f32[1,4], index: 5, kind: input, shape index: {}]
  %s6 = inlined_call_operand.vmem [shape: f32[1,16], index: 6, kind: input, shape index: {}]
  %s7 = inlined_call_operand.vmem [shape: bf16[2,256,16], index: 7, kind: output, shape index: {}]
  %s8 = sld [smem:[#allocation0]]
  $region61: #{tpu_custom_call.1} parent=0
    _
  %s10 = ssub.s32 1, %s8
  %s11 = scalar_select 0, %s10, %s8
  loop: start=0, step=1, limit=4
  $region2: #{tpu_custom_call.1} parent=0 // loop_pre_header
    _
  $region3: #{tpu_custom_call.1} parent=0 // loop_header
    %s13 = sphi 0, %s17
    %p14 = scmp.ge.s32.totalorder %s13, 4
    %s23 = sphi 0, %s25
    %s26 = sphi 0, %s23
    %s27 = sphi 0, %s26
    %s43 = sphi 0, %s27
    %s47 = sphi 0, %s47
    %s49 = sphi 0, %s47
    %s50 = sphi 0, %s49
    %s64 = sphi 0, %s50
    %s68 = sphi 0, %s68
    %s70 = sphi 0, %s68
    %s71 = sphi 0, %s70
    %s85 = sphi 0, %s71
    %s89 = sphi 0, %s89
    %s91 = sphi 0, %s89
    %s92 = sphi 0, %s91
    %s106 = sphi 0, %s92
    %s110 = sphi 0, %s110
    %s112 = sphi 0, %s110
    %s113 = sphi 0, %s112
    %s127 = sphi 0, %s113
    %s131 = sphi 0, %s131
    %s133 = sphi 0, %s131
    %s134 = sphi 0, %s133
    %s148 = sphi 0, %s134
    %s152 = sphi 0, %s152
    %s154 = sphi 0, %s152
    %s155 = sphi 0, %s154
    %s169 = sphi 0, %s155
    %s175 = sphi 0, %s177
    %s178 = sphi 0, %s175
    %s179 = sphi 0, %s178
    %s195 = sphi 0, %s179
  $region4: #{tpu_custom_call.1} parent=0 // loop_header_branch
    %16 = sbr.rel (%p14) target = $region8
  $region5: #{tpu_custom_call.1} parent=0 // loop_body
    %s18 = ssub.s32 %s13, 1
    %s19 = ssub.s32 %s13, 2
    %s20 = sadd.s32 %s13, 1
    %s21 = ssub.s32 %s13, %s20
    %p22 = scmp.eq.s32.totalorder %s21, 0
    %s24 = sadd.s32 %s23, 1
    %s25 = scalar_select %p22, %s23, %s24
    %p28 = pneg %p22
    %p29 = scmp.eq.s32.totalorder %s13, 1
    %p30 = por %p28, %p29
    %p31 = scmp.ne.s32.totalorder %s23, %s26
    %p32 = scmp.eq.s32.totalorder %s13, 0
    %p33 = por %p31, %p32
    %p34 = scmp.ne.s32.totalorder %s23, %s26
    %p35 = scmp.eq.s32.totalorder %s18, 1
    %p36 = por %p34, %p35
    %p37 = scmp.ne.s32.totalorder %s26, %s27
    %p38 = scmp.eq.s32.totalorder %s18, 0
    %p39 = por %p37, %p38
    %p40 = scmp.ne.s32.totalorder %s26, %s27
    %p41 = scmp.eq.s32.totalorder %s19, 1
    %p42 = por %p40, %p41
    %p44 = scmp.ne.s32.totalorder %s27, %s43
    %p45 = scmp.eq.s32.totalorder %s19, 0
    %p46 = por %p44, %p45
    %s48 = sadd.s32 %s47, 1
    %p51 = scmp.eq.s32.totalorder %s13, 1
    %p52 = scmp.ne.s32.totalorder %s47, %s49
    %p53 = scmp.eq.s32.totalorder %s13, 0
    %p54 = por %p52, %p53
    %p55 = scmp.ne.s32.totalorder %s47, %s49
    %p56 = scmp.eq.s32.totalorder %s18, 1
    %p57 = por %p55, %p56
    %p58 = scmp.ne.s32.totalorder %s49, %s50
    %p59 = scmp.eq.s32.totalorder %s18, 0
    %p60 = por %p58, %p59
    %p61 = scmp.ne.s32.totalorder %s49, %s50
    %p62 = scmp.eq.s32.totalorder %s19, 1
    %p63 = por %p61, %p62
    %p65 = scmp.ne.s32.totalorder %s50, %s64
    %p66 = scmp.eq.s32.totalorder %s19, 0
    %p67 = por %p65, %p66
    %s69 = sadd.s32 %s68, 1
    %p72 = scmp.eq.s32.totalorder %s13, 1
    %p73 = scmp.ne.s32.totalorder %s68, %s70
    %p74 = scmp.eq.s32.totalorder %s13, 0
    %p75 = por %p73, %p74
    %p76 = scmp.ne.s32.totalorder %s68, %s70
    %p77 = scmp.eq.s32.totalorder %s18, 1
    %p78 = por %p76, %p77
    %p79 = scmp.ne.s32.totalorder %s70, %s71
    %p80 = scmp.eq.s32.totalorder %s18, 0
    %p81 = por %p79, %p80
    %p82 = scmp.ne.s32.totalorder %s70, %s71
    %p83 = scmp.eq.s32.totalorder %s19, 1
    %p84 = por %p82, %p83
    %p86 = scmp.ne.s32.totalorder %s71, %s85
    %p87 = scmp.eq.s32.totalorder %s19, 0
    %p88 = por %p86, %p87
    %s90 = sadd.s32 %s89, 1
    %p93 = scmp.eq.s32.totalorder %s13, 1
    %p94 = scmp.ne.s32.totalorder %s89, %s91
    %p95 = scmp.eq.s32.totalorder %s13, 0
    %p96 = por %p94, %p95
    %p97 = scmp.ne.s32.totalorder %s89, %s91
    %p98 = scmp.eq.s32.totalorder %s18, 1
    %p99 = por %p97, %p98
    %p100 = scmp.ne.s32.totalorder %s91, %s92
    %p101 = scmp.eq.s32.totalorder %s18, 0
    %p102 = por %p100, %p101
    %p103 = scmp.ne.s32.totalorder %s91, %s92
    %p104 = scmp.eq.s32.totalorder %s19, 1
    %p105 = por %p103, %p104
    %p107 = scmp.ne.s32.totalorder %s92, %s106
    %p108 = scmp.eq.s32.totalorder %s19, 0
    %p109 = por %p107, %p108
    %s111 = sadd.s32 %s110, 1
    %p114 = scmp.eq.s32.totalorder %s13, 1
    %p115 = scmp.ne.s32.totalorder %s110, %s112
    %p116 = scmp.eq.s32.totalorder %s13, 0
    %p117 = por %p115, %p116
    %p118 = scmp.ne.s32.totalorder %s110, %s112
    %p119 = scmp.eq.s32.totalorder %s18, 1
    %p120 = por %p118, %p119
    %p121 = scmp.ne.s32.totalorder %s112, %s113
    %p122 = scmp.eq.s32.totalorder %s18, 0
    %p123 = por %p121, %p122
    %p124 = scmp.ne.s32.totalorder %s112, %s113
    %p125 = scmp.eq.s32.totalorder %s19, 1
    %p126 = por %p124, %p125
    %p128 = scmp.ne.s32.totalorder %s113, %s127
    %p129 = scmp.eq.s32.totalorder %s19, 0
    %p130 = por %p128, %p129
    %s132 = sadd.s32 %s131, 1
    %p135 = scmp.eq.s32.totalorder %s13, 1
    %p136 = scmp.ne.s32.totalorder %s131, %s133
    %p137 = scmp.eq.s32.totalorder %s13, 0
    %p138 = por %p136, %p137
    %p139 = scmp.ne.s32.totalorder %s131, %s133
    %p140 = scmp.eq.s32.totalorder %s18, 1
    %p141 = por %p139, %p140
    %p142 = scmp.ne.s32.totalorder %s133, %s134
    %p143 = scmp.eq.s32.totalorder %s18, 0
    %p144 = por %p142, %p143
    %p145 = scmp.ne.s32.totalorder %s133, %s134
    %p146 = scmp.eq.s32.totalorder %s19, 1
    %p147 = por %p145, %p146
    %p149 = scmp.ne.s32.totalorder %s134, %s148
    %p150 = scmp.eq.s32.totalorder %s19, 0
    %p151 = por %p149, %p150
    %s153 = sadd.s32 %s152, 1
    %p156 = scmp.eq.s32.totalorder %s13, 1
    %p157 = scmp.ne.s32.totalorder %s152, %s154
    %p158 = scmp.eq.s32.totalorder %s13, 0
    %p159 = por %p157, %p158
    %p160 = scmp.ne.s32.totalorder %s152, %s154
    %p161 = scmp.eq.s32.totalorder %s18, 1
    %p162 = por %p160, %p161
    %p163 = scmp.ne.s32.totalorder %s154, %s155
    %p164 = scmp.eq.s32.totalorder %s18, 0
    %p165 = por %p163, %p164
    %p166 = scmp.ne.s32.totalorder %s154, %s155
    %p167 = scmp.eq.s32.totalorder %s19, 1
    %p168 = por %p166, %p167
    %p170 = scmp.ne.s32.totalorder %s155, %s169
    %p171 = scmp.eq.s32.totalorder %s19, 0
    %p172 = por %p170, %p171
    %s173 = ssub.s32 %s13, %s20
    %p174 = scmp.eq.s32.totalorder %s173, 0
    %s176 = sadd.s32 %s175, 1
    %s177 = scalar_select %p174, %s175, %s176
    %p180 = pneg %p174
    %p181 = scmp.eq.s32.totalorder %s13, 1
    %p182 = por %p180, %p181
    %p183 = scmp.ne.s32.totalorder %s175, %s178
    %p184 = scmp.eq.s32.totalorder %s13, 0
    %p185 = por %p183, %p184
    %p186 = scmp.ne.s32.totalorder %s175, %s178
    %p187 = scmp.eq.s32.totalorder %s18, 1
    %p188 = por %p186, %p187
    %p189 = scmp.ne.s32.totalorder %s178, %s179
    %p190 = scmp.eq.s32.totalorder %s18, 0
    %p191 = por %p189, %p190
    %p192 = scmp.ne.s32.totalorder %s178, %s179
    %p193 = scmp.eq.s32.totalorder %s19, 1
    %p194 = por %p192, %p193
    %p196 = scmp.ne.s32.totalorder %s179, %s195
    %p197 = scmp.eq.s32.totalorder %s19, 0
    %p198 = por %p196, %p197
    %p199 = scmp.le.s32.totalorder 1, %s13
    %p200 = scmp.lt.s32.totalorder %s13, 3
    %p201 = pnand %p199, %p200
    %p202 = pneg %p201
    // Predicated region
    $region9: #{tpu_custom_call.1} parent=5 // pred_check
      _
    $region10: #{tpu_custom_call.1} parent=5 // pred_check_branch
      %204 = sbr.rel (%p201) target = $region12
    $region11: #{tpu_custom_call.1} parent=5 // pred_region
      %s205 = ssub.s32 %s13, 1
      // Predicated region
      $region13: #{tpu_custom_call.1} parent=11 // pred_check
        %p206 = pneg %p60
      $region14: #{tpu_custom_call.1} parent=11 // pred_check_branch
        %208 = sbr.rel (%p206) target = $region16
      $region15: #{tpu_custom_call.1} parent=11 // pred_region
        _
      $region16: #{tpu_custom_call.1} parent=11 // pred_fallthru
        _
      // Predicated region
      $region17: #{tpu_custom_call.1} parent=11 // pred_check
        %p209 = pneg %p81
      $region18: #{tpu_custom_call.1} parent=11 // pred_check_branch
        %211 = sbr.rel (%p209) target = $region20
      $region19: #{tpu_custom_call.1} parent=11 // pred_region
        _
      $region20: #{tpu_custom_call.1} parent=11 // pred_fallthru
        _
      // Predicated region
      $region21: #{tpu_custom_call.1} parent=11 // pred_check
        %p212 = pneg %p102
      $region22: #{tpu_custom_call.1} parent=11 // pred_check_branch
        %214 = sbr.rel (%p212) target = $region24
      $region23: #{tpu_custom_call.1} parent=11 // pred_region
        _
      $region24: #{tpu_custom_call.1} parent=11 // pred_fallthru
        _
      // Predicated region
      $region25: #{tpu_custom_call.1} parent=11 // pred_check
        %p215 = pneg %p123
      $region26: #{tpu_custom_call.1} parent=11 // pred_check_branch
        %217 = sbr.rel (%p215) target = $region28
      $region27: #{tpu_custom_call.1} parent=11 // pred_region
        _
      $region28: #{tpu_custom_call.1} parent=11 // pred_fallthru
        _
      // Predicated region
      $region29: #{tpu_custom_call.1} parent=11 // pred_check
        %p218 = pneg %p144
      $region30: #{tpu_custom_call.1} parent=11 // pred_check_branch
        %220 = sbr.rel (%p218) target = $region32
      $region31: #{tpu_custom_call.1} parent=11 // pred_region
        _
      $region32: #{tpu_custom_call.1} parent=11 // pred_fallthru
        _
      // Predicated region
      $region33: #{tpu_custom_call.1} parent=11 // pred_check
        %p221 = pneg %p165
      $region34: #{tpu_custom_call.1} parent=11 // pred_check_branch
        %223 = sbr.rel (%p221) target = $region36
      $region35: #{tpu_custom_call.1} parent=11 // pred_region
        _
      $region36: #{tpu_custom_call.1} parent=11 // pred_fallthru
        _
    $region12: #{tpu_custom_call.1} parent=5 // pred_fallthru
      _
    %p224 = scmp.lt.s32.totalorder %s13, 2
    // Predicated region
    $region37: #{tpu_custom_call.1} parent=5 // pred_check
      %p225 = pneg %p224
    $region38: #{tpu_custom_call.1} parent=5 // pred_check_branch
      %227 = sbr.rel (%p225) target = $region40
    $region39: #{tpu_custom_call.1} parent=5 // pred_region
      // Predicated region
      $region41: #{tpu_custom_call.1} parent=39 // pred_check
        %p228 = pneg %p33
      $region42: #{tpu_custom_call.1} parent=39 // pred_check_branch
        %230 = sbr.rel (%p228) target = $region44
      $region43: #{tpu_custom_call.1} parent=39 // pred_region
        %p231 = scmp.lt.s32.totalorder %s13, 1
        %s232 = scalar_select %p231, %s13, 1
        %s233 = smul.addr %s232, 32
        %s234 = smul.addr %s233, 4
        %s235 = scalar_lea.vmem %s0, %s234
      $region44: #{tpu_custom_call.1} parent=39 // pred_fallthru
        _
    $region40: #{tpu_custom_call.1} parent=5 // pred_fallthru
      _
    %p236 = scmp.le.s32.totalorder 1, %s13
    %p237 = scmp.lt.s32.totalorder %s13, 3
    %p238 = pnand %p236, %p237
    %p239 = pneg %p238
    // Predicated region
    $region45: #{tpu_custom_call.1} parent=5 // pred_check
      _
    $region46: #{tpu_custom_call.1} parent=5 // pred_check_branch
      %241 = sbr.rel (%p238) target = $region48
    $region47: #{tpu_custom_call.1} parent=5 // pred_region
      %s242 = ssub.s32 %s13, 1
      %p243 = scmp.lt.s32.totalorder %s18, 1
      %s244 = scalar_select %p243, %s18, 1
      %s245 = smul.addr %s244, 32
      %s246 = smul.addr %s245, 4
      %s247 = scalar_lea.vmem %s0, %s246
      %p248 = pneg %p39
      %p249 = pneg %p36
      %p250 = pneg %p60
      %p251 = pneg %p57
      %p252 = pneg %p81
      %p253 = pneg %p78
      %p254 = pneg %p102
      %p255 = pneg %p99
      %p256 = pneg %p123
      %p257 = pneg %p120
      %p258 = pneg %p144
      %p259 = pneg %p141
      %p260 = pneg %p165
      %p261 = pneg %p162
      %p262 = pneg %p191
      %p263 = pneg %p188
      %p264 = scmp.lt.s32.totalorder %s18, 1
      %s265 = scalar_select %p264, %s18, 1
      %s266 = smul.addr %s265, 32
      %s267 = smul.addr %s266, 4
      %s268 = scalar_lea.vmem %s7, %s267
      %p269 = scmp.lt.s32.totalorder %s18, 1
      %s270 = scalar_select %p269, %s18, 1
      %s271 = smul.addr %s270, 32
      %s272 = smul.addr %s271, 4
      %s273 = scalar_lea.vmem %s0, %s272
      %p274 = scmp.lt.s32.totalorder %s18, 1
      %s275 = scalar_select %p274, %s18, 1
      %s276 = smul.addr %s275, 32
      %s277 = smul.addr %s276, 4
      %s278 = scalar_lea.vmem %s7, %s277
      %v280 = vld [vmem:[%s273] sm:$0xf]
      %v281 = vld [vmem:[%s273 + $0x4] sm:$0xf]
      %v282 = vld [vmem:[%s273 + $0x8] sm:$0xf]
      %v283 = vld [vmem:[%s273 + $0xc] sm:$0xf]
      %v284 = vld [vmem:[%s273 + $0x10] sm:$0xf]
      %v285 = vld [vmem:[%s273 + $0x14] sm:$0xf]
      %v286 = vld [vmem:[%s273 + $0x18] sm:$0xf]
      %v287 = vld [vmem:[%s273 + $0x1c] sm:$0xf]
      %v288 = vld [vmem:[%s273 + $0x20] sm:$0xf]
      %v289 = vld [vmem:[%s273 + $0x24] sm:$0xf]
      %v290 = vld [vmem:[%s273 + $0x28] sm:$0xf]
      %v291 = vld [vmem:[%s273 + $0x2c] sm:$0xf]
      %v292 = vld [vmem:[%s273 + $0x30] sm:$0xf]
      %v293 = vld [vmem:[%s273 + $0x34] sm:$0xf]
      %v294 = vld [vmem:[%s273 + $0x38] sm:$0xf]
      %v295 = vld [vmem:[%s273 + $0x3c] sm:$0xf]
      %v296 = vld [vmem:[%s273 + $0x40] sm:$0xf]
      %v297 = vld [vmem:[%s273 + $0x44] sm:$0xf]
      %v298 = vld [vmem:[%s273 + $0x48] sm:$0xf]
      %v299 = vld [vmem:[%s273 + $0x4c] sm:$0xf]
      %v300 = vld [vmem:[%s273 + $0x50] sm:$0xf]
      %v301 = vld [vmem:[%s273 + $0x54] sm:$0xf]
      %v302 = vld [vmem:[%s273 + $0x58] sm:$0xf]
      %v303 = vld [vmem:[%s273 + $0x5c] sm:$0xf]
      %v304 = vld [vmem:[%s273 + $0x60] sm:$0xf]
      %v305 = vld [vmem:[%s273 + $0x64] sm:$0xf]
      %v306 = vld [vmem:[%s273 + $0x68] sm:$0xf]
      %v307 = vld [vmem:[%s273 + $0x6c] sm:$0xf]
      %v308 = vld [vmem:[%s273 + $0x70] sm:$0xf]
      %v309 = vld [vmem:[%s273 + $0x74] sm:$0xf]
      %v310 = vld [vmem:[%s273 + $0x78] sm:$0xf]
      %v311 = vld [vmem:[%s273 + $0x7c] sm:$0xf]
      %v312 = vld [vmem:[%s1] sm:$0xf]
      %v313 = vld [vmem:[%s1 + $0x4] sm:$0xf]
      %v314 = vld [vmem:[%s4] sm:$0x1]
      %v316 = vlaneseq
      %v317 = vshrl.u32 %v316, 7
      %v318 = vsub.s32 0, %v317
      %v319 = vrot.slane %v314, %v318
      %v353 = vunpack.c.l.b16 %v280
      %v354 = vunpack.c.l.b16 %v281
      %v355 = vunpack.c.l.b16 %v282
      %v356 = vunpack.c.l.b16 %v283
      %v357 = vunpack.c.l.b16 %v284
      %v358 = vunpack.c.l.b16 %v285
      %v359 = vunpack.c.l.b16 %v286
      %v360 = vunpack.c.l.b16 %v287
      %v361 = vunpack.c.l.b16 %v288
      %v362 = vunpack.c.l.b16 %v289
      %v363 = vunpack.c.l.b16 %v290
      %v364 = vunpack.c.l.b16 %v291
      %v365 = vunpack.c.l.b16 %v292
      %v366 = vunpack.c.l.b16 %v293
      %v367 = vunpack.c.l.b16 %v294
      %v368 = vunpack.c.l.b16 %v295
      %v369 = vunpack.c.l.b16 %v296
      %v370 = vunpack.c.l.b16 %v297
      %v371 = vunpack.c.l.b16 %v298
      %v372 = vunpack.c.l.b16 %v299
      %v373 = vunpack.c.l.b16 %v300
      %v374 = vunpack.c.l.b16 %v301
      %v375 = vunpack.c.l.b16 %v302
      %v376 = vunpack.c.l.b16 %v303
      %v377 = vunpack.c.l.b16 %v304
      %v378 = vunpack.c.l.b16 %v305
      %v379 = vunpack.c.l.b16 %v306
      %v380 = vunpack.c.l.b16 %v307
      %v381 = vunpack.c.l.b16 %v308
      %v382 = vunpack.c.l.b16 %v309
      %v383 = vunpack.c.l.b16 %v310
      %v384 = vunpack.c.l.b16 %v311
      %v385 = vpack.c.b16 %v354, %v353
      %v386 = vpack.c.b16 %v356, %v355
      %v387 = vpack.c.b16 %v358, %v357
      %v388 = vpack.c.b16 %v360, %v359
      %v389 = vpack.c.b16 %v362, %v361
      %v390 = vpack.c.b16 %v364, %v363
      %v391 = vpack.c.b16 %v366, %v365
      %v392 = vpack.c.b16 %v368, %v367
      %v393 = vpack.c.b16 %v370, %v369
      %v394 = vpack.c.b16 %v372, %v371
      %v395 = vpack.c.b16 %v374, %v373
      %v396 = vpack.c.b16 %v376, %v375
      %v397 = vpack.c.b16 %v378, %v377
      %v398 = vpack.c.b16 %v380, %v379
      %v399 = vpack.c.b16 %v382, %v381
      %v400 = vpack.c.b16 %v384, %v383
      %v403 = vunpack.c.l.b16 %v312
      %v404 = vunpack.c.l.b16 %v313
      %v405 = vpack.c.b16 %v404, %v403
      %vm407 = vcmask 130048
      %v409 = vsel %vm407, %v385, 0
      %v412 = vsel %vm407, %v386, 0
      %v415 = vsel %vm407, %v387, 0
      %v418 = vsel %vm407, %v388, 0
      %v421 = vsel %vm407, %v389, 0
      %v424 = vsel %vm407, %v390, 0
      %v427 = vsel %vm407, %v391, 0
      %v430 = vsel %vm407, %v392, 0
      %v433 = vsel %vm407, %v393, 0
      %v436 = vsel %vm407, %v394, 0
      %v439 = vsel %vm407, %v395, 0
      %v442 = vsel %vm407, %v396, 0
      %v445 = vsel %vm407, %v397, 0
      %v448 = vsel %vm407, %v398, 0
      %v451 = vsel %vm407, %v399, 0
      %v454 = vsel %vm407, %v400, 0
      %456 = vmatprep.subr.bf16.mxu0 0
      %457 = vmatpush1.bf16.msra.mxu0 %v405
      %458 = vmatprep.subr.bf16.mxu0 0
      %459 = vmatpush1.bf16.msra.mxu0 0
      %460 = vmatprep.subr.bf16.mxu0 0
      %461 = vmatpush1.bf16.msra.mxu0 0
      %462 = vmatprep.subr.bf16.mxu0 0
      %463 = vmatpush1.bf16.msra.mxu0 0
      %464 = vmatprep.subr.bf16.mxu0 0
      %465 = vmatpush1.bf16.msra.mxu0 0
      %466 = vmatprep.subr.bf16.mxu0 0
      %467 = vmatpush1.bf16.msra.mxu0 0
      %468 = vmatprep.subr.bf16.mxu0 0
      %469 = vmatpush1.bf16.msra.mxu0 0
      %470 = vmatprep.subr.bf16.mxu0 0
      %471 = vmatpush1.bf16.msra.mxu0 0
      %472 = vmatprep.subr.bf16.mxu0 0
      %473 = vmatpush1.bf16.msra.mxu0 0
      %474 = vmatprep.subr.bf16.mxu0 0
      %475 = vmatpush1.bf16.msra.mxu0 0
      %476 = vmatprep.subr.bf16.mxu0 0
      %477 = vmatpush1.bf16.msra.mxu0 0
      %478 = vmatprep.subr.bf16.mxu0 0
      %479 = vmatpush1.bf16.msra.mxu0 0
      %480 = vmatprep.subr.bf16.mxu0 0
      %481 = vmatpush1.bf16.msra.mxu0 0
      %482 = vmatprep.subr.bf16.mxu0 0
      %483 = vmatpush1.bf16.msra.mxu0 0
      %484 = vmatprep.subr.bf16.mxu0 0
      %485 = vmatpush1.bf16.msra.mxu0 0
      %486 = vmatprep.subr.bf16.mxu0 0
      %487 = vmatpush1.bf16.msra.mxu0 0
      %488 = vmatprep.mubr.bf16.mxu0 0
      %489 = vmatmul.mubr.bf16.gmra.mrb[0].mxu0 %v409
      %v490 = vpop.f32.mrb[0].mxu0
      %v491 = vadd.f32 %v319, %v490
      %v492 = vpop.f32.mrb[0].mxu0
      %v493 = vpop.f32.mrb[0].mxu0
      %v494 = vadd.f32 %v319, %v493
      %v495 = vpop.f32.mrb[0].mxu0
      %496 = vmatprep.mubr.bf16.mxu0 0
      %497 = vmatmul.mubr.bf16.gmra.mrb[0].mxu0 %v412
      %v498 = vpop.f32.mrb[0].mxu0
      %v499 = vadd.f32 %v319, %v498
      %v500 = vpop.f32.mrb[0].mxu0
      %v501 = vpop.f32.mrb[0].mxu0
      %v502 = vadd.f32 %v319, %v501
      %v503 = vpop.f32.mrb[0].mxu0
      %504 = vmatprep.mubr.bf16.mxu0 0
      %505 = vmatmul.mubr.bf16.gmra.mrb[0].mxu0 %v415
      %v506 = vpop.f32.mrb[0].mxu0
      %v507 = vadd.f32 %v319, %v506
      %v508 = vpop.f32.mrb[0].mxu0
      %v509 = vpop.f32.mrb[0].mxu0
      %v510 = vadd.f32 %v319, %v509
      %v511 = vpop.f32.mrb[0].mxu0
      %512 = vmatprep.mubr.bf16.mxu0 0
      %513 = vmatmul.mubr.bf16.gmra.mrb[0].mxu0 %v418
      %v514 = vpop.f32.mrb[0].mxu0
      %v515 = vadd.f32 %v319, %v514
      %v516 = vpop.f32.mrb[0].mxu0
      %v517 = vpop.f32.mrb[0].mxu0
      %v518 = vadd.f32 %v319, %v517
      %v519 = vpop.f32.mrb[0].mxu0
      %520 = vmatprep.mubr.bf16.mxu0 0
      %521 = vmatmul.mubr.bf16.gmra.mrb[0].mxu0 %v421
      %v522 = vpop.f32.mrb[0].mxu0
      %v523 = vadd.f32 %v319, %v522
      %v524 = vpop.f32.mrb[0].mxu0
      %v525 = vpop.f32.mrb[0].mxu0
      %v526 = vadd.f32 %v319, %v525
      %v527 = vpop.f32.mrb[0].mxu0
      %528 = vmatprep.mubr.bf16.mxu0 0
      %529 = vmatmul.mubr.bf16.gmra.mrb[0].mxu0 %v424
      %v530 = vpop.f32.mrb[0].mxu0
      %v531 = vadd.f32 %v319, %v530
      %v532 = vpop.f32.mrb[0].mxu0
      %v533 = vpop.f32.mrb[0].mxu0
      %v534 = vadd.f32 %v319, %v533
      %v535 = vpop.f32.mrb[0].mxu0
      %536 = vmatprep.mubr.bf16.mxu0 0
      %537 = vmatmul.mubr.bf16.gmra.mrb[0].mxu0 %v427
      %v538 = vpop.f32.mrb[0].mxu0
      %v539 = vadd.f32 %v319, %v538
      %v540 = vpop.f32.mrb[0].mxu0
      %v541 = vpop.f32.mrb[0].mxu0
      %v542 = vadd.f32 %v319, %v541
      %v543 = vpop.f32.mrb[0].mxu0
      %544 = vmatprep.mubr.bf16.mxu0 0
      %545 = vmatmul.mubr.bf16.gmra.mrb[0].mxu0 %v430
      %v546 = vpop.f32.mrb[0].mxu0
      %v547 = vadd.f32 %v319, %v546
      %v548 = vpop.f32.mrb[0].mxu0
      %v549 = vpop.f32.mrb[0].mxu0
      %v550 = vadd.f32 %v319, %v549
      %v551 = vpop.f32.mrb[0].mxu0
      %552 = vmatprep.mubr.bf16.mxu0 0
      %553 = vmatmul.mubr.bf16.gmra.mrb[0].mxu0 %v433
      %v554 = vpop.f32.mrb[0].mxu0
      %v555 = vadd.f32 %v319, %v554
      %v556 = vpop.f32.mrb[0].mxu0
      %v557 = vpop.f32.mrb[0].mxu0
      %v558 = vadd.f32 %v319, %v557
      %v559 = vpop.f32.mrb[0].mxu0
      %560 = vmatprep.mubr.bf16.mxu0 0
      %561 = vmatmul.mubr.bf16.gmra.mrb[0].mxu0 %v436
      %v562 = vpop.f32.mrb[0].mxu0
      %v563 = vadd.f32 %v319, %v562
      %v564 = vpop.f32.mrb[0].mxu0
      %v565 = vpop.f32.mrb[0].mxu0
      %v566 = vadd.f32 %v319, %v565
      %v567 = vpop.f32.mrb[0].mxu0
      %568 = vmatprep.mubr.bf16.mxu0 0
      %569 = vmatmul.mubr.bf16.gmra.mrb[0].mxu0 %v439
      %v570 = vpop.f32.mrb[0].mxu0
      %v571 = vadd.f32 %v319, %v570
      %v572 = vpop.f32.mrb[0].mxu0
      %v573 = vpop.f32.mrb[0].mxu0
      %v574 = vadd.f32 %v319, %v573
      %v575 = vpop.f32.mrb[0].mxu0
      %576 = vmatprep.mubr.bf16.mxu0 0
      %577 = vmatmul.mubr.bf16.gmra.mrb[0].mxu0 %v442
      %v578 = vpop.f32.mrb[0].mxu0
      %v579 = vadd.f32 %v319, %v578
      %v580 = vpop.f32.mrb[0].mxu0
      %v581 = vpop.f32.mrb[0].mxu0
      %v582 = vadd.f32 %v319, %v581
      %v583 = vpop.f32.mrb[0].mxu0
      %584 = vmatprep.mubr.bf16.mxu0 0
      %585 = vmatmul.mubr.bf16.gmra.mrb[0].mxu0 %v445
      %v586 = vpop.f32.mrb[0].mxu0
      %v587 = vadd.f32 %v319, %v586
      %v588 = vpop.f32.mrb[0].mxu0
      %v589 = vpop.f32.mrb[0].mxu0
      %v590 = vadd.f32 %v319, %v589
      %v591 = vpop.f32.mrb[0].mxu0
      %592 = vmatprep.mubr.bf16.mxu0 0
      %593 = vmatmul.mubr.bf16.gmra.mrb[0].mxu0 %v448
      %v594 = vpop.f32.mrb[0].mxu0
      %v595 = vadd.f32 %v319, %v594
      %v596 = vpop.f32.mrb[0].mxu0
      %v597 = vpop.f32.mrb[0].mxu0
      %v598 = vadd.f32 %v319, %v597
      %v599 = vpop.f32.mrb[0].mxu0
      %600 = vmatprep.mubr.bf16.mxu0 0
      %601 = vmatmul.mubr.bf16.gmra.mrb[0].mxu0 %v451
      %v602 = vpop.f32.mrb[0].mxu0
      %v603 = vadd.f32 %v319, %v602
      %v604 = vpop.f32.mrb[0].mxu0
      %v605 = vpop.f32.mrb[0].mxu0
      %v606 = vadd.f32 %v319, %v605
      %v607 = vpop.f32.mrb[0].mxu0
      %608 = vmatprep.mubr.bf16.mxu0 0
      %609 = vmatmul.mubr.bf16.gmra.mrb[0].mxu0 %v454
      %v610 = vpop.f32.mrb[0].mxu0
      %v611 = vadd.f32 %v319, %v610
      %v612 = vpop.f32.mrb[0].mxu0
      %v613 = vpop.f32.mrb[0].mxu0
      %v614 = vadd.f32 %v319, %v613
      %v615 = vpop.f32.mrb[0].mxu0
      %616 = vdwg.mxu0
      %v617 = vmax.f32 %v491, 0.0
      %v618 = vmax.f32 %v494, 0.0
      %v619 = vmax.f32 %v499, 0.0
      %v620 = vmax.f32 %v502, 0.0
      %v621 = vmax.f32 %v507, 0.0
      %v622 = vmax.f32 %v510, 0.0
      %v623 = vmax.f32 %v515, 0.0
      %v624 = vmax.f32 %v518, 0.0
      %v625 = vmax.f32 %v523, 0.0
      %v626 = vmax.f32 %v526, 0.0
      %v627 = vmax.f32 %v531, 0.0
      %v628 = vmax.f32 %v534, 0.0
      %v629 = vmax.f32 %v539, 0.0
      %v630 = vmax.f32 %v542, 0.0
      %v631 = vmax.f32 %v547, 0.0
      %v632 = vmax.f32 %v550, 0.0
      %v633 = vmax.f32 %v555, 0.0
      %v634 = vmax.f32 %v558, 0.0
      %v635 = vmax.f32 %v563, 0.0
      %v636 = vmax.f32 %v566, 0.0
      %v637 = vmax.f32 %v571, 0.0
      %v638 = vmax.f32 %v574, 0.0
      %v639 = vmax.f32 %v579, 0.0
      %v640 = vmax.f32 %v582, 0.0
      %v641 = vmax.f32 %v587, 0.0
      %v642 = vmax.f32 %v590, 0.0
      %v643 = vmax.f32 %v595, 0.0
      %v644 = vmax.f32 %v598, 0.0
      %v645 = vmax.f32 %v603, 0.0
      %v646 = vmax.f32 %v606, 0.0
      %v647 = vmax.f32 %v611, 0.0
      %v648 = vmax.f32 %v614, 0.0
      %v649 = vlaneseq
      %v650 = vshrl.u32 %v649, 7
      %v651 = vadd.s32 %v650, 8
      %v652 = vadd.s32 %v650, 16
      %v653 = vadd.s32 %v650, 24
      %v654 = vadd.s32 %v650, 32
      %v655 = vadd.s32 %v650, 40
      %v656 = vadd.s32 %v650, 48
      %v657 = vadd.s32 %v650, 56
      %v658 = vadd.s32 %v650, 64
      %v659 = vadd.s32 %v650, 72
      %v660 = vadd.s32 %v650, 80
      %v661 = vadd.s32 %v650, 88
      %v662 = vadd.s32 %v650, 96
      %v663 = vadd.s32 %v650, 104
      %v664 = vadd.s32 %v650, 112
      %v665 = vadd.s32 %v650, 120
      %v666 = vadd.s32 %v650, 128
      %v667 = vadd.s32 %v650, 136
      %v668 = vadd.s32 %v650, 144
      %v669 = vadd.s32 %v650, 152
      %v670 = vadd.s32 %v650, 160
      %v671 = vadd.s32 %v650, 168
      %v672 = vadd.s32 %v650, 176
      %v673 = vadd.s32 %v650, 184
      %v674 = vadd.s32 %v650, 192
      %v675 = vadd.s32 %v650, 200
      %v676 = vadd.s32 %v650, 208
      %v677 = vadd.s32 %v650, 216
      %v678 = vadd.s32 %v650, 224
      %v679 = vadd.s32 %v650, 232
      %v680 = vadd.s32 %v650, 240
      %v681 = vadd.s32 %v650, 248
      %vm682 = vcmp.lt.s32.totalorder %v650, 0
      %v683 = vsub.s32 0, %v650
      %v684 = vsel %vm682, %v683, %v650
      %v685 = vshrl.u32 %v684, 4
      %v686 = vand.u32 %v684, 15
      %v687 = vsub.s32 0, %v686
      %v688 = vsel %vm682, %v687, %v686
      %vm689 = vcmp.lt.s32.totalorder %v651, 0
      %v690 = vsub.s32 0, %v651
      %v691 = vsel %vm689, %v690, %v651
      %v692 = vshrl.u32 %v691, 4
      %v693 = vand.u32 %v691, 15
      %v694 = vsub.s32 0, %v693
      %v695 = vsel %vm689, %v694, %v693
      %vm696 = vcmp.lt.s32.totalorder %v652, 0
      %v697 = vsub.s32 0, %v652
      %v698 = vsel %vm696, %v697, %v652
      %v699 = vshrl.u32 %v698, 4
      %v700 = vand.u32 %v698, 15
      %v701 = vsub.s32 0, %v700
      %v702 = vsel %vm696, %v701, %v700
      %vm703 = vcmp.lt.s32.totalorder %v653, 0
      %v704 = vsub.s32 0, %v653
      %v705 = vsel %vm703, %v704, %v653
      %v706 = vshrl.u32 %v705, 4
      %v707 = vand.u32 %v705, 15
      %v708 = vsub.s32 0, %v707
      %v709 = vsel %vm703, %v708, %v707
      %vm710 = vcmp.lt.s32.totalorder %v654, 0
      %v711 = vsub.s32 0, %v654
      %v712 = vsel %vm710, %v711, %v654
      %v713 = vshrl.u32 %v712, 4
      %v714 = vand.u32 %v712, 15
      %v715 = vsub.s32 0, %v714
      %v716 = vsel %vm710, %v715, %v714
      %vm717 = vcmp.lt.s32.totalorder %v655, 0
      %v718 = vsub.s32 0, %v655
      %v719 = vsel %vm717, %v718, %v655
      %v720 = vshrl.u32 %v719, 4
      %v721 = vand.u32 %v719, 15
      %v722 = vsub.s32 0, %v721
      %v723 = vsel %vm717, %v722, %v721
      %vm724 = vcmp.lt.s32.totalorder %v656, 0
      %v725 = vsub.s32 0, %v656
      %v726 = vsel %vm724, %v725, %v656
      %v727 = vshrl.u32 %v726, 4
      %v728 = vand.u32 %v726, 15
      %v729 = vsub.s32 0, %v728
      %v730 = vsel %vm724, %v729, %v728
      %vm731 = vcmp.lt.s32.totalorder %v657, 0
      %v732 = vsub.s32 0, %v657
      %v733 = vsel %vm731, %v732, %v657
      %v734 = vshrl.u32 %v733, 4
      %v735 = vand.u32 %v733, 15
      %v736 = vsub.s32 0, %v735
      %v737 = vsel %vm731, %v736, %v735
      %vm738 = vcmp.lt.s32.totalorder %v658, 0
      %v739 = vsub.s32 0, %v658
      %v740 = vsel %vm738, %v739, %v658
      %v741 = vshrl.u32 %v740, 4
      %v742 = vand.u32 %v740, 15
      %v743 = vsub.s32 0, %v742
      %v744 = vsel %vm738, %v743, %v742
      %vm745 = vcmp.lt.s32.totalorder %v659, 0
      %v746 = vsub.s32 0, %v659
      %v747 = vsel %vm745, %v746, %v659
      %v748 = vshrl.u32 %v747, 4
      %v749 = vand.u32 %v747, 15
      %v750 = vsub.s32 0, %v749
      %v751 = vsel %vm745, %v750, %v749
      %vm752 = vcmp.lt.s32.totalorder %v660, 0
      %v753 = vsub.s32 0, %v660
      %v754 = vsel %vm752, %v753, %v660
      %v755 = vshrl.u32 %v754, 4
      %v756 = vand.u32 %v754, 15
      %v757 = vsub.s32 0, %v756
      %v758 = vsel %vm752, %v757, %v756
      %vm759 = vcmp.lt.s32.totalorder %v661, 0
      %v760 = vsub.s32 0, %v661
      %v761 = vsel %vm759, %v760, %v661
      %v762 = vshrl.u32 %v761, 4
      %v763 = vand.u32 %v761, 15
      %v764 = vsub.s32 0, %v763
      %v765 = vsel %vm759, %v764, %v763
      %vm766 = vcmp.lt.s32.totalorder %v662, 0
      %v767 = vsub.s32 0, %v662
      %v768 = vsel %vm766, %v767, %v662
      %v769 = vshrl.u32 %v768, 4
      %v770 = vand.u32 %v768, 15
      %v771 = vsub.s32 0, %v770
      %v772 = vsel %vm766, %v771, %v770
      %vm773 = vcmp.lt.s32.totalorder %v663, 0
      %v774 = vsub.s32 0, %v663
      %v775 = vsel %vm773, %v774, %v663
      %v776 = vshrl.u32 %v775, 4
      %v777 = vand.u32 %v775, 15
      %v778 = vsub.s32 0, %v777
      %v779 = vsel %vm773, %v778, %v777
      %vm780 = vcmp.lt.s32.totalorder %v664, 0
      %v781 = vsub.s32 0, %v664
      %v782 = vsel %vm780, %v781, %v664
      %v783 = vshrl.u32 %v782, 4
      %v784 = vand.u32 %v782, 15
      %v785 = vsub.s32 0, %v784
      %v786 = vsel %vm780, %v785, %v784
      %vm787 = vcmp.lt.s32.totalorder %v665, 0
      %v788 = vsub.s32 0, %v665
      %v789 = vsel %vm787, %v788, %v665
      %v790 = vshrl.u32 %v789, 4
      %v791 = vand.u32 %v789, 15
      %v792 = vsub.s32 0, %v791
      %v793 = vsel %vm787, %v792, %v791
      %vm794 = vcmp.lt.s32.totalorder %v666, 0
      %v795 = vsub.s32 0, %v666
      %v796 = vsel %vm794, %v795, %v666
      %v797 = vshrl.u32 %v796, 4
      %v798 = vand.u32 %v796, 15
      %v799 = vsub.s32 0, %v798
      %v800 = vsel %vm794, %v799, %v798
      %vm801 = vcmp.lt.s32.totalorder %v667, 0
      %v802 = vsub.s32 0, %v667
      %v803 = vsel %vm801, %v802, %v667
      %v804 = vshrl.u32 %v803, 4
      %v805 = vand.u32 %v803, 15
      %v806 = vsub.s32 0, %v805
      %v807 = vsel %vm801, %v806, %v805
      %vm808 = vcmp.lt.s32.totalorder %v668, 0
      %v809 = vsub.s32 0, %v668
      %v810 = vsel %vm808, %v809, %v668
      %v811 = vshrl.u32 %v810, 4
      %v812 = vand.u32 %v810, 15
      %v813 = vsub.s32 0, %v812
      %v814 = vsel %vm808, %v813, %v812
      %vm815 = vcmp.lt.s32.totalorder %v669, 0
      %v816 = vsub.s32 0, %v669
      %v817 = vsel %vm815, %v816, %v669
      %v818 = vshrl.u32 %v817, 4
      %v819 = vand.u32 %v817, 15
      %v820 = vsub.s32 0, %v819
      %v821 = vsel %vm815, %v820, %v819
      %vm822 = vcmp.lt.s32.totalorder %v670, 0
      %v823 = vsub.s32 0, %v670
      %v824 = vsel %vm822, %v823, %v670
      %v825 = vshrl.u32 %v824, 4
      %v826 = vand.u32 %v824, 15
      %v827 = vsub.s32 0, %v826
      %v828 = vsel %vm822, %v827, %v826
      %vm829 = vcmp.lt.s32.totalorder %v671, 0
      %v830 = vsub.s32 0, %v671
      %v831 = vsel %vm829, %v830, %v671
      %v832 = vshrl.u32 %v831, 4
      %v833 = vand.u32 %v831, 15
      %v834 = vsub.s32 0, %v833
      %v835 = vsel %vm829, %v834, %v833
      %vm836 = vcmp.lt.s32.totalorder %v672, 0
      %v837 = vsub.s32 0, %v672
      %v838 = vsel %vm836, %v837, %v672
      %v839 = vshrl.u32 %v838, 4
      %v840 = vand.u32 %v838, 15
      %v841 = vsub.s32 0, %v840
      %v842 = vsel %vm836, %v841, %v840
      %vm843 = vcmp.lt.s32.totalorder %v673, 0
      %v844 = vsub.s32 0, %v673
      %v845 = vsel %vm843, %v844, %v673
      %v846 = vshrl.u32 %v845, 4
      %v847 = vand.u32 %v845, 15
      %v848 = vsub.s32 0, %v847
      %v849 = vsel %vm843, %v848, %v847
      %vm850 = vcmp.lt.s32.totalorder %v674, 0
      %v851 = vsub.s32 0, %v674
      %v852 = vsel %vm850, %v851, %v674
      %v853 = vshrl.u32 %v852, 4
      %v854 = vand.u32 %v852, 15
      %v855 = vsub.s32 0, %v854
      %v856 = vsel %vm850, %v855, %v854
      %vm857 = vcmp.lt.s32.totalorder %v675, 0
      %v858 = vsub.s32 0, %v675
      %v859 = vsel %vm857, %v858, %v675
      %v860 = vshrl.u32 %v859, 4
      %v861 = vand.u32 %v859, 15
      %v862 = vsub.s32 0, %v861
      %v863 = vsel %vm857, %v862, %v861
      %vm864 = vcmp.lt.s32.totalorder %v676, 0
      %v865 = vsub.s32 0, %v676
      %v866 = vsel %vm864, %v865, %v676
      %v867 = vshrl.u32 %v866, 4
      %v868 = vand.u32 %v866, 15
      %v869 = vsub.s32 0, %v868
      %v870 = vsel %vm864, %v869, %v868
      %vm871 = vcmp.lt.s32.totalorder %v677, 0
      %v872 = vsub.s32 0, %v677
      %v873 = vsel %vm871, %v872, %v677
      %v874 = vshrl.u32 %v873, 4
      %v875 = vand.u32 %v873, 15
      %v876 = vsub.s32 0, %v875
      %v877 = vsel %vm871, %v876, %v875
      %vm878 = vcmp.lt.s32.totalorder %v678, 0
      %v879 = vsub.s32 0, %v678
      %v880 = vsel %vm878, %v879, %v678
      %v881 = vshrl.u32 %v880, 4
      %v882 = vand.u32 %v880, 15
      %v883 = vsub.s32 0, %v882
      %v884 = vsel %vm878, %v883, %v882
      %vm885 = vcmp.lt.s32.totalorder %v679, 0
      %v886 = vsub.s32 0, %v679
      %v887 = vsel %vm885, %v886, %v679
      %v888 = vshrl.u32 %v887, 4
      %v889 = vand.u32 %v887, 15
      %v890 = vsub.s32 0, %v889
      %v891 = vsel %vm885, %v890, %v889
      %vm892 = vcmp.lt.s32.totalorder %v680, 0
      %v893 = vsub.s32 0, %v680
      %v894 = vsel %vm892, %v893, %v680
      %v895 = vshrl.u32 %v894, 4
      %v896 = vand.u32 %v894, 15
      %v897 = vsub.s32 0, %v896
      %v898 = vsel %vm892, %v897, %v896
      %vm899 = vcmp.lt.s32.totalorder %v681, 0
      %v900 = vsub.s32 0, %v681
      %v901 = vsel %vm899, %v900, %v681
      %v902 = vshrl.u32 %v901, 4
      %v903 = vand.u32 %v901, 15
      %v904 = vsub.s32 0, %v903
      %v905 = vsel %vm899, %v904, %v903
      %vm906 = vcmp.ne.s32.totalorder %v688, 0
      %vm907 = vcmp.ne.s32.totalorder %v695, 0
      %vm908 = vcmp.ne.s32.totalorder %v702, 0
      %vm909 = vcmp.ne.s32.totalorder %v709, 0
      %vm910 = vcmp.ne.s32.totalorder %v716, 0
      %vm911 = vcmp.ne.s32.totalorder %v723, 0
      %vm912 = vcmp.ne.s32.totalorder %v730, 0
      %vm913 = vcmp.ne.s32.totalorder %v737, 0
      %vm914 = vcmp.ne.s32.totalorder %v744, 0
      %vm915 = vcmp.ne.s32.totalorder %v751, 0
      %vm916 = vcmp.ne.s32.totalorder %v758, 0
      %vm917 = vcmp.ne.s32.totalorder %v765, 0
      %vm918 = vcmp.ne.s32.totalorder %v772, 0
      %vm919 = vcmp.ne.s32.totalorder %v779, 0
      %vm920 = vcmp.ne.s32.totalorder %v786, 0
      %vm921 = vcmp.ne.s32.totalorder %v793, 0
      %vm922 = vcmp.ne.s32.totalorder %v800, 0
      %vm923 = vcmp.ne.s32.totalorder %v807, 0
      %vm924 = vcmp.ne.s32.totalorder %v814, 0
      %vm925 = vcmp.ne.s32.totalorder %v821, 0
      %vm926 = vcmp.ne.s32.totalorder %v828, 0
      %vm927 = vcmp.ne.s32.totalorder %v835, 0
      %vm928 = vcmp.ne.s32.totalorder %v842, 0
      %vm929 = vcmp.ne.s32.totalorder %v849, 0
      %vm930 = vcmp.ne.s32.totalorder %v856, 0
      %vm931 = vcmp.ne.s32.totalorder %v863, 0
      %vm932 = vcmp.ne.s32.totalorder %v870, 0
      %vm933 = vcmp.ne.s32.totalorder %v877, 0
      %vm934 = vcmp.ne.s32.totalorder %v884, 0
      %vm935 = vcmp.ne.s32.totalorder %v891, 0
      %vm936 = vcmp.ne.s32.totalorder %v898, 0
      %vm937 = vcmp.ne.s32.totalorder %v905, 0
      %vm938 = vcmp.lt.s32.totalorder %v688, 0
      %vm939 = vcmp.lt.s32.totalorder %v695, 0
      %vm940 = vcmp.lt.s32.totalorder %v702, 0
      %vm941 = vcmp.lt.s32.totalorder %v709, 0
      %vm942 = vcmp.lt.s32.totalorder %v716, 0
      %vm943 = vcmp.lt.s32.totalorder %v723, 0
      %vm944 = vcmp.lt.s32.totalorder %v730, 0
      %vm945 = vcmp.lt.s32.totalorder %v737, 0
      %vm946 = vcmp.lt.s32.totalorder %v744, 0
      %vm947 = vcmp.lt.s32.totalorder %v751, 0
      %vm948 = vcmp.lt.s32.totalorder %v758, 0
      %vm949 = vcmp.lt.s32.totalorder %v765, 0
      %vm950 = vcmp.lt.s32.totalorder %v772, 0
      %vm951 = vcmp.lt.s32.totalorder %v779, 0
      %vm952 = vcmp.lt.s32.totalorder %v786, 0
      %vm953 = vcmp.lt.s32.totalorder %v793, 0
      %vm954 = vcmp.lt.s32.totalorder %v800, 0
      %vm955 = vcmp.lt.s32.totalorder %v807, 0
      %vm956 = vcmp.lt.s32.totalorder %v814, 0
      %vm957 = vcmp.lt.s32.totalorder %v821, 0
      %vm958 = vcmp.lt.s32.totalorder %v828, 0
      %vm959 = vcmp.lt.s32.totalorder %v835, 0
      %vm960 = vcmp.lt.s32.totalorder %v842, 0
      %vm961 = vcmp.lt.s32.totalorder %v849, 0
      %vm962 = vcmp.lt.s32.totalorder %v856, 0
      %vm963 = vcmp.lt.s32.totalorder %v863, 0
      %vm964 = vcmp.lt.s32.totalorder %v870, 0
      %vm965 = vcmp.lt.s32.totalorder %v877, 0
      %vm966 = vcmp.lt.s32.totalorder %v884, 0
      %vm967 = vcmp.lt.s32.totalorder %v891, 0
      %vm968 = vcmp.lt.s32.totalorder %v898, 0
      %vm969 = vcmp.lt.s32.totalorder %v905, 0
      %vm970 = vmand %vm938, %vm906
      %vm971 = vmand %vm939, %vm907
      %vm972 = vmand %vm940, %vm908
      %vm973 = vmand %vm941, %vm909
      %vm974 = vmand %vm942, %vm910
      %vm975 = vmand %vm943, %vm911
      %vm976 = vmand %vm944, %vm912
      %vm977 = vmand %vm945, %vm913
      %vm978 = vmand %vm946, %vm914
      %vm979 = vmand %vm947, %vm915
      %vm980 = vmand %vm948, %vm916
      %vm981 = vmand %vm949, %vm917
      %vm982 = vmand %vm950, %vm918
      %vm983 = vmand %vm951, %vm919
      %vm984 = vmand %vm952, %vm920
      %vm985 = vmand %vm953, %vm921
      %vm986 = vmand %vm954, %vm922
      %vm987 = vmand %vm955, %vm923
      %vm988 = vmand %vm956, %vm924
      %vm989 = vmand %vm957, %vm925
      %vm990 = vmand %vm958, %vm926
      %vm991 = vmand %vm959, %vm927
      %vm992 = vmand %vm960, %vm928
      %vm993 = vmand %vm961, %vm929
      %vm994 = vmand %vm962, %vm930
      %vm995 = vmand %vm963, %vm931
      %vm996 = vmand %vm964, %vm932
      %vm997 = vmand %vm965, %vm933
      %vm998 = vmand %vm966, %vm934
      %vm999 = vmand %vm967, %vm935
      %vm1000 = vmand %vm968, %vm936
      %vm1001 = vmand %vm969, %vm937
      %v1002 = vadd.s32 %v688, 16
      %v1003 = vadd.s32 %v695, 16
      %v1004 = vadd.s32 %v702, 16
      %v1005 = vadd.s32 %v709, 16
      %v1006 = vadd.s32 %v716, 16
      %v1007 = vadd.s32 %v723, 16
      %v1008 = vadd.s32 %v730, 16
      %v1009 = vadd.s32 %v737, 16
      %v1010 = vadd.s32 %v744, 16
      %v1011 = vadd.s32 %v751, 16
      %v1012 = vadd.s32 %v758, 16
      %v1013 = vadd.s32 %v765, 16
      %v1014 = vadd.s32 %v772, 16
      %v1015 = vadd.s32 %v779, 16
      %v1016 = vadd.s32 %v786, 16
      %v1017 = vadd.s32 %v793, 16
      %v1018 = vadd.s32 %v800, 16
      %v1019 = vadd.s32 %v807, 16
      %v1020 = vadd.s32 %v814, 16
      %v1021 = vadd.s32 %v821, 16
      %v1022 = vadd.s32 %v828, 16
      %v1023 = vadd.s32 %v835, 16
      %v1024 = vadd.s32 %v842, 16
      %v1025 = vadd.s32 %v849, 16
      %v1026 = vadd.s32 %v856, 16
      %v1027 = vadd.s32 %v863, 16
      %v1028 = vadd.s32 %v870, 16
      %v1029 = vadd.s32 %v877, 16
      %v1030 = vadd.s32 %v884, 16
      %v1031 = vadd.s32 %v891, 16
      %v1032 = vadd.s32 %v898, 16
      %v1033 = vadd.s32 %v905, 16
      %v1034 = vsel %vm970, %v1002, %v688
      %v1035 = vsel %vm971, %v1003, %v695
      %v1036 = vsel %vm972, %v1004, %v702
      %v1037 = vsel %vm973, %v1005, %v709
      %v1038 = vsel %vm974, %v1006, %v716
      %v1039 = vsel %vm975, %v1007, %v723
      %v1040 = vsel %vm976, %v1008, %v730
      %v1041 = vsel %vm977, %v1009, %v737
      %v1042 = vsel %vm978, %v1010, %v744
      %v1043 = vsel %vm979, %v1011, %v751
      %v1044 = vsel %vm980, %v1012, %v758
      %v1045 = vsel %vm981, %v1013, %v765
      %v1046 = vsel %vm982, %v1014, %v772
      %v1047 = vsel %vm983, %v1015, %v779
      %v1048 = vsel %vm984, %v1016, %v786
      %v1049 = vsel %vm985, %v1017, %v793
      %v1050 = vsel %vm986, %v1018, %v800
      %v1051 = vsel %vm987, %v1019, %v807
      %v1052 = vsel %vm988, %v1020, %v814
      %v1053 = vsel %vm989, %v1021, %v821
      %v1054 = vsel %vm990, %v1022, %v828
      %v1055 = vsel %vm991, %v1023, %v835
      %v1056 = vsel %vm992, %v1024, %v842
      %v1057 = vsel %vm993, %v1025, %v849
      %v1058 = vsel %vm994, %v1026, %v856
      %v1059 = vsel %vm995, %v1027, %v863
      %v1060 = vsel %vm996, %v1028, %v870
      %v1061 = vsel %vm997, %v1029, %v877
      %v1062 = vsel %vm998, %v1030, %v884
      %v1063 = vsel %vm999, %v1031, %v891
      %v1064 = vsel %vm1000, %v1032, %v898
      %v1065 = vsel %vm1001, %v1033, %v905
      %vm1066 = vcmp.eq.s32.totalorder %v1034, 0
      %vm1067 = vcmp.eq.s32.totalorder %v1035, 0
      %vm1068 = vcmp.eq.s32.totalorder %v1036, 0
      %vm1069 = vcmp.eq.s32.totalorder %v1037, 0
      %vm1070 = vcmp.eq.s32.totalorder %v1038, 0
      %vm1071 = vcmp.eq.s32.totalorder %v1039, 0
      %vm1072 = vcmp.eq.s32.totalorder %v1040, 0
      %vm1073 = vcmp.eq.s32.totalorder %v1041, 0
      %vm1074 = vcmp.eq.s32.totalorder %v1042, 0
      %vm1075 = vcmp.eq.s32.totalorder %v1043, 0
      %vm1076 = vcmp.eq.s32.totalorder %v1044, 0
      %vm1077 = vcmp.eq.s32.totalorder %v1045, 0
      %vm1078 = vcmp.eq.s32.totalorder %v1046, 0
      %vm1079 = vcmp.eq.s32.totalorder %v1047, 0
      %vm1080 = vcmp.eq.s32.totalorder %v1048, 0
      %vm1081 = vcmp.eq.s32.totalorder %v1049, 0
      %vm1082 = vcmp.eq.s32.totalorder %v1050, 0
      %vm1083 = vcmp.eq.s32.totalorder %v1051, 0
      %vm1084 = vcmp.eq.s32.totalorder %v1052, 0
      %vm1085 = vcmp.eq.s32.totalorder %v1053, 0
      %vm1086 = vcmp.eq.s32.totalorder %v1054, 0
      %vm1087 = vcmp.eq.s32.totalorder %v1055, 0
      %vm1088 = vcmp.eq.s32.totalorder %v1056, 0
      %vm1089 = vcmp.eq.s32.totalorder %v1057, 0
      %vm1090 = vcmp.eq.s32.totalorder %v1058, 0
      %vm1091 = vcmp.eq.s32.totalorder %v1059, 0
      %vm1092 = vcmp.eq.s32.totalorder %v1060, 0
      %vm1093 = vcmp.eq.s32.totalorder %v1061, 0
      %vm1094 = vcmp.eq.s32.totalorder %v1062, 0
      %vm1095 = vcmp.eq.s32.totalorder %v1063, 0
      %vm1096 = vcmp.eq.s32.totalorder %v1064, 0
      %vm1097 = vcmp.eq.s32.totalorder %v1065, 0
      %v1098 = vrot.slane %v617, 7
      %v1099 = vrot.slane %v618, 7
      %v1100 = vrot.slane %v619, 7
      %v1101 = vrot.slane %v620, 7
      %v1102 = vrot.slane %v621, 7
      %v1103 = vrot.slane %v622, 7
      %v1104 = vrot.slane %v623, 7
      %v1105 = vrot.slane %v624, 7
      %v1106 = vrot.slane %v625, 7
      %v1107 = vrot.slane %v626, 7
      %v1108 = vrot.slane %v627, 7
      %v1109 = vrot.slane %v628, 7
      %v1110 = vrot.slane %v629, 7
      %v1111 = vrot.slane %v630, 7
      %v1112 = vrot.slane %v631, 7
      %v1113 = vrot.slane %v632, 7
      %v1114 = vrot.slane %v633, 7
      %v1115 = vrot.slane %v634, 7
      %v1116 = vrot.slane %v635, 7
      %v1117 = vrot.slane %v636, 7
      %v1118 = vrot.slane %v637, 7
      %v1119 = vrot.slane %v638, 7
      %v1120 = vrot.slane %v639, 7
      %v1121 = vrot.slane %v640, 7
      %v1122 = vrot.slane %v641, 7
      %v1123 = vrot.slane %v642, 7
      %v1124 = vrot.slane %v643, 7
      %v1125 = vrot.slane %v644, 7
      %v1126 = vrot.slane %v645, 7
      %v1127 = vrot.slane %v646, 7
      %v1128 = vrot.slane %v647, 7
      %v1129 = vrot.slane %v648, 7
      %vm1130 = vcmp.lt.s32.totalorder %v650, 1
      %v1131 = vsel %vm1130, %v1128, %v1129
      %v1132 = vsel %vm1130, %v1127, %v1128
      %v1133 = vsel %vm1130, %v1126, %v1127
      %v1134 = vsel %vm1130, %v1125, %v1126
      %v1135 = vsel %vm1130, %v1124, %v1125
      %v1136 = vsel %vm1130, %v1123, %v1124
      %v1137 = vsel %vm1130, %v1122, %v1123
      %v1138 = vsel %vm1130, %v1121, %v1122
      %v1139 = vsel %vm1130, %v1120, %v1121
      %v1140 = vsel %vm1130, %v1119, %v1120
      %v1141 = vsel %vm1130, %v1118, %v1119
      %v1142 = vsel %vm1130, %v1117, %v1118
      %v1143 = vsel %vm1130, %v1116, %v1117
      %v1144 = vsel %vm1130, %v1115, %v1116
      %v1145 = vsel %vm1130, %v1114, %v1115
      %v1146 = vsel %vm1130, %v1113, %v1114
      %v1147 = vsel %vm1130, %v1112, %v1113
      %v1148 = vsel %vm1130, %v1111, %v1112
      %v1149 = vsel %vm1130, %v1110, %v1111
      %v1150 = vsel %vm1130, %v1109, %v1110
      %v1151 = vsel %vm1130, %v1108, %v1109
      %v1152 = vsel %vm1130, %v1107, %v1108
      %v1153 = vsel %vm1130, %v1106, %v1107
      %v1154 = vsel %vm1130, %v1105, %v1106
      %v1155 = vsel %vm1130, %v1104, %v1105
      %v1156 = vsel %vm1130, %v1103, %v1104
      %v1157 = vsel %vm1130, %v1102, %v1103
      %v1158 = vsel %vm1130, %v1101, %v1102
      %v1159 = vsel %vm1130, %v1100, %v1101
      %v1160 = vsel %vm1130, %v1099, %v1100
      %v1161 = vsel %vm1130, %v1098, %v1099
      %v1162 = vsel %vm1130, %v1129, %v1098
      %v1163 = vsel %vm1066, 0.0, %v1162
      %v1164 = vsel %vm1067, 0.0, %v1161
      %v1165 = vsel %vm1068, 0.0, %v1160
      %v1166 = vsel %vm1069, 0.0, %v1159
      %v1167 = vsel %vm1070, 0.0, %v1158
      %v1168 = vsel %vm1071, 0.0, %v1157
      %v1169 = vsel %vm1072, 0.0, %v1156
      %v1170 = vsel %vm1073, 0.0, %v1155
      %v1171 = vsel %vm1074, 0.0, %v1154
      %v1172 = vsel %vm1075, 0.0, %v1153
      %v1173 = vsel %vm1076, 0.0, %v1152
      %v1174 = vsel %vm1077, 0.0, %v1151
      %v1175 = vsel %vm1078, 0.0, %v1150
      %v1176 = vsel %vm1079, 0.0, %v1149
      %v1177 = vsel %vm1080, 0.0, %v1148
      %v1178 = vsel %vm1081, 0.0, %v1147
      %v1179 = vsel %vm1082, 0.0, %v1146
      %v1180 = vsel %vm1083, 0.0, %v1145
      %v1181 = vsel %vm1084, 0.0, %v1144
      %v1182 = vsel %vm1085, 0.0, %v1143
      %v1183 = vsel %vm1086, 0.0, %v1142
      %v1184 = vsel %vm1087, 0.0, %v1141
      %v1185 = vsel %vm1088, 0.0, %v1140
      %v1186 = vsel %vm1089, 0.0, %v1139
      %v1187 = vsel %vm1090, 0.0, %v1138
      %v1188 = vsel %vm1091, 0.0, %v1137
      %v1189 = vsel %vm1092, 0.0, %v1136
      %v1190 = vsel %vm1093, 0.0, %v1135
      %v1191 = vsel %vm1094, 0.0, %v1134
      %v1192 = vsel %vm1095, 0.0, %v1133
      %v1193 = vsel %vm1096, 0.0, %v1132
      %v1194 = vsel %vm1097, 0.0, %v1131
      %vm1195 = vcmp.eq.s32.totalorder %v1034, 15
      %vm1196 = vcmp.eq.s32.totalorder %v1035, 15
      %vm1197 = vcmp.eq.s32.totalorder %v1036, 15
      %vm1198 = vcmp.eq.s32.totalorder %v1037, 15
      %vm1199 = vcmp.eq.s32.totalorder %v1038, 15
      %vm1200 = vcmp.eq.s32.totalorder %v1039, 15
      %vm1201 = vcmp.eq.s32.totalorder %v1040, 15
      %vm1202 = vcmp.eq.s32.totalorder %v1041, 15
      %vm1203 = vcmp.eq.s32.totalorder %v1042, 15
      %vm1204 = vcmp.eq.s32.totalorder %v1043, 15
      %vm1205 = vcmp.eq.s32.totalorder %v1044, 15
      %vm1206 = vcmp.eq.s32.totalorder %v1045, 15
      %vm1207 = vcmp.eq.s32.totalorder %v1046, 15
      %vm1208 = vcmp.eq.s32.totalorder %v1047, 15
      %vm1209 = vcmp.eq.s32.totalorder %v1048, 15
      %vm1210 = vcmp.eq.s32.totalorder %v1049, 15
      %vm1211 = vcmp.eq.s32.totalorder %v1050, 15
      %vm1212 = vcmp.eq.s32.totalorder %v1051, 15
      %vm1213 = vcmp.eq.s32.totalorder %v1052, 15
      %vm1214 = vcmp.eq.s32.totalorder %v1053, 15
      %vm1215 = vcmp.eq.s32.totalorder %v1054, 15
      %vm1216 = vcmp.eq.s32.totalorder %v1055, 15
      %vm1217 = vcmp.eq.s32.totalorder %v1056, 15
      %vm1218 = vcmp.eq.s32.totalorder %v1057, 15
      %vm1219 = vcmp.eq.s32.totalorder %v1058, 15
      %vm1220 = vcmp.eq.s32.totalorder %v1059, 15
      %vm1221 = vcmp.eq.s32.totalorder %v1060, 15
      %vm1222 = vcmp.eq.s32.totalorder %v1061, 15
      %vm1223 = vcmp.eq.s32.totalorder %v1062, 15
      %vm1224 = vcmp.eq.s32.totalorder %v1063, 15
      %vm1225 = vcmp.eq.s32.totalorder %v1064, 15
      %vm1226 = vcmp.eq.s32.totalorder %v1065, 15
      %v1227 = vrot.slane %v617, 1
      %v1228 = vrot.slane %v618, 1
      %v1229 = vrot.slane %v619, 1
      %v1230 = vrot.slane %v620, 1
      %v1231 = vrot.slane %v621, 1
      %v1232 = vrot.slane %v622, 1
      %v1233 = vrot.slane %v623, 1
      %v1234 = vrot.slane %v624, 1
      %v1235 = vrot.slane %v625, 1
      %v1236 = vrot.slane %v626, 1
      %v1237 = vrot.slane %v627, 1
      %v1238 = vrot.slane %v628, 1
      %v1239 = vrot.slane %v629, 1
      %v1240 = vrot.slane %v630, 1
      %v1241 = vrot.slane %v631, 1
      %v1242 = vrot.slane %v632, 1
      %v1243 = vrot.slane %v633, 1
      %v1244 = vrot.slane %v634, 1
      %v1245 = vrot.slane %v635, 1
      %v1246 = vrot.slane %v636, 1
      %v1247 = vrot.slane %v637, 1
      %v1248 = vrot.slane %v638, 1
      %v1249 = vrot.slane %v639, 1
      %v1250 = vrot.slane %v640, 1
      %v1251 = vrot.slane %v641, 1
      %v1252 = vrot.slane %v642, 1
      %v1253 = vrot.slane %v643, 1
      %v1254 = vrot.slane %v644, 1
      %v1255 = vrot.slane %v645, 1
      %v1256 = vrot.slane %v646, 1
      %v1257 = vrot.slane %v647, 1
      %v1258 = vrot.slane %v648, 1
      %vm1259 = vcmp.lt.s32.totalorder %v650, 7
      %v1260 = vsel %vm1259, %v1257, %v1258
      %v1261 = vsel %vm1259, %v1256, %v1257
      %v1262 = vsel %vm1259, %v1255, %v1256
      %v1263 = vsel %vm1259, %v1254, %v1255
      %v1264 = vsel %vm1259, %v1253, %v1254
      %v1265 = vsel %vm1259, %v1252, %v1253
      %v1266 = vsel %vm1259, %v1251, %v1252
      %v1267 = vsel %vm1259, %v1250, %v1251
      %v1268 = vsel %vm1259, %v1249, %v1250
      %v1269 = vsel %vm1259, %v1248, %v1249
      %v1270 = vsel %vm1259, %v1247, %v1248
      %v1271 = vsel %vm1259, %v1246, %v1247
      %v1272 = vsel %vm1259, %v1245, %v1246
      %v1273 = vsel %vm1259, %v1244, %v1245
      %v1274 = vsel %vm1259, %v1243, %v1244
      %v1275 = vsel %vm1259, %v1242, %v1243
      %v1276 = vsel %vm1259, %v1241, %v1242
      %v1277 = vsel %vm1259, %v1240, %v1241
      %v1278 = vsel %vm1259, %v1239, %v1240
      %v1279 = vsel %vm1259, %v1238, %v1239
      %v1280 = vsel %vm1259, %v1237, %v1238
      %v1281 = vsel %vm1259, %v1236, %v1237
      %v1282 = vsel %vm1259, %v1235, %v1236
      %v1283 = vsel %vm1259, %v1234, %v1235
      %v1284 = vsel %vm1259, %v1233, %v1234
      %v1285 = vsel %vm1259, %v1232, %v1233
      %v1286 = vsel %vm1259, %v1231, %v1232
      %v1287 = vsel %vm1259, %v1230, %v1231
      %v1288 = vsel %vm1259, %v1229, %v1230
      %v1289 = vsel %vm1259, %v1228, %v1229
      %v1290 = vsel %vm1259, %v1227, %v1228
      %v1291 = vsel %vm1259, %v1258, %v1227
      %v1292 = vsel %vm1195, 0.0, %v1290
      %v1293 = vsel %vm1196, 0.0, %v1289
      %v1294 = vsel %vm1197, 0.0, %v1288
      %v1295 = vsel %vm1198, 0.0, %v1287
      %v1296 = vsel %vm1199, 0.0, %v1286
      %v1297 = vsel %vm1200, 0.0, %v1285
      %v1298 = vsel %vm1201, 0.0, %v1284
      %v1299 = vsel %vm1202, 0.0, %v1283
      %v1300 = vsel %vm1203, 0.0, %v1282
      %v1301 = vsel %vm1204, 0.0, %v1281
      %v1302 = vsel %vm1205, 0.0, %v1280
      %v1303 = vsel %vm1206, 0.0, %v1279
      %v1304 = vsel %vm1207, 0.0, %v1278
      %v1305 = vsel %vm1208, 0.0, %v1277
      %v1306 = vsel %vm1209, 0.0, %v1276
      %v1307 = vsel %vm1210, 0.0, %v1275
      %v1308 = vsel %vm1211, 0.0, %v1274
      %v1309 = vsel %vm1212, 0.0, %v1273
      %v1310 = vsel %vm1213, 0.0, %v1272
      %v1311 = vsel %vm1214, 0.0, %v1271
      %v1312 = vsel %vm1215, 0.0, %v1270
      %v1313 = vsel %vm1216, 0.0, %v1269
      %v1314 = vsel %vm1217, 0.0, %v1268
      %v1315 = vsel %vm1218, 0.0, %v1267
      %v1316 = vsel %vm1219, 0.0, %v1266
      %v1317 = vsel %vm1220, 0.0, %v1265
      %v1318 = vsel %vm1221, 0.0, %v1264
      %v1319 = vsel %vm1222, 0.0, %v1263
      %v1320 = vsel %vm1223, 0.0, %v1262
      %v1321 = vsel %vm1224, 0.0, %v1261
      %v1322 = vsel %vm1225, 0.0, %v1260
      %v1323 = vsel %vm1226, 0.0, %v1291
      %v1324 = vpack.c.bf16 %v1164, %v1163
      %v1325 = vpack.c.bf16 %v1166, %v1165
      %v1326 = vpack.c.bf16 %v1168, %v1167
      %v1327 = vpack.c.bf16 %v1170, %v1169
      %v1328 = vpack.c.bf16 %v1172, %v1171
      %v1329 = vpack.c.bf16 %v1174, %v1173
      %v1330 = vpack.c.bf16 %v1176, %v1175
      %v1331 = vpack.c.bf16 %v1178, %v1177
      %v1332 = vpack.c.bf16 %v1180, %v1179
      %v1333 = vpack.c.bf16 %v1182, %v1181
      %v1334 = vpack.c.bf16 %v1184, %v1183
      %v1335 = vpack.c.bf16 %v1186, %v1185
      %v1336 = vpack.c.bf16 %v1188, %v1187
      %v1337 = vpack.c.bf16 %v1190, %v1189
      %v1338 = vpack.c.bf16 %v1192, %v1191
      %v1339 = vpack.c.bf16 %v1194, %v1193
      %v1340 = vpack.c.bf16 %v618, %v617
      %v1341 = vpack.c.bf16 %v620, %v619
      %v1342 = vpack.c.bf16 %v622, %v621
      %v1343 = vpack.c.bf16 %v624, %v623
      %v1344 = vpack.c.bf16 %v626, %v625
      %v1345 = vpack.c.bf16 %v628, %v627
      %v1346 = vpack.c.bf16 %v630, %v629
      %v1347 = vpack.c.bf16 %v632, %v631
      %v1348 = vpack.c.bf16 %v634, %v633
      %v1349 = vpack.c.bf16 %v636, %v635
      %v1350 = vpack.c.bf16 %v638, %v637
      %v1351 = vpack.c.bf16 %v640, %v639
      %v1352 = vpack.c.bf16 %v642, %v641
      %v1353 = vpack.c.bf16 %v644, %v643
      %v1354 = vpack.c.bf16 %v646, %v645
      %v1355 = vpack.c.bf16 %v648, %v647
      %v1356 = vpack.c.bf16 %v1293, %v1292
      %v1357 = vpack.c.bf16 %v1295, %v1294
      %v1358 = vpack.c.bf16 %v1297, %v1296
      %v1359 = vpack.c.bf16 %v1299, %v1298
      %v1360 = vpack.c.bf16 %v1301, %v1300
      %v1361 = vpack.c.bf16 %v1303, %v1302
      %v1362 = vpack.c.bf16 %v1305, %v1304
      %v1363 = vpack.c.bf16 %v1307, %v1306
      %v1364 = vpack.c.bf16 %v1309, %v1308
      %v1365 = vpack.c.bf16 %v1311, %v1310
      %v1366 = vpack.c.bf16 %v1313, %v1312
      %v1367 = vpack.c.bf16 %v1315, %v1314
      %v1368 = vpack.c.bf16 %v1317, %v1316
      %v1369 = vpack.c.bf16 %v1319, %v1318
      %v1370 = vpack.c.bf16 %v1321, %v1320
      %v1371 = vpack.c.bf16 %v1323, %v1322
      %1388 = vrot.lane.b32.xlu0 %v1340, 4
      %v1389 = vpop.permute.xlu0 %1388
      %1390 = vrot.lane.b32.xlu0 %v1341, 4
      %v1391 = vpop.permute.xlu0 %1390
      %1392 = vrot.lane.b32.xlu0 %v1342, 4
      %v1393 = vpop.permute.xlu0 %1392
      %1394 = vrot.lane.b32.xlu0 %v1343, 4
      %v1395 = vpop.permute.xlu0 %1394
      %1396 = vrot.lane.b32.xlu0 %v1344, 4
      %v1397 = vpop.permute.xlu0 %1396
      %1398 = vrot.lane.b32.xlu0 %v1345, 4
      %v1399 = vpop.permute.xlu0 %1398
      %1400 = vrot.lane.b32.xlu0 %v1346, 4
      %v1401 = vpop.permute.xlu0 %1400
      %1402 = vrot.lane.b32.xlu0 %v1347, 4
      %v1403 = vpop.permute.xlu0 %1402
      %1404 = vrot.lane.b32.xlu0 %v1348, 4
      %v1405 = vpop.permute.xlu0 %1404
      %1406 = vrot.lane.b32.xlu0 %v1349, 4
      %v1407 = vpop.permute.xlu0 %1406
      %1408 = vrot.lane.b32.xlu0 %v1350, 4
      %v1409 = vpop.permute.xlu0 %1408
      %1410 = vrot.lane.b32.xlu0 %v1351, 4
      %v1411 = vpop.permute.xlu0 %1410
      %1412 = vrot.lane.b32.xlu0 %v1352, 4
      %v1413 = vpop.permute.xlu0 %1412
      %1414 = vrot.lane.b32.xlu0 %v1353, 4
      %v1415 = vpop.permute.xlu0 %1414
      %1416 = vrot.lane.b32.xlu0 %v1354, 4
      %v1417 = vpop.permute.xlu0 %1416
      %1418 = vrot.lane.b32.xlu0 %v1355, 4
      %v1419 = vpop.permute.xlu0 %1418
      %1436 = vrot.lane.b32.xlu0 %v1356, 8
      %v1437 = vpop.permute.xlu0 %1436
      %1438 = vrot.lane.b32.xlu0 %v1357, 8
      %v1439 = vpop.permute.xlu0 %1438
      %1440 = vrot.lane.b32.xlu0 %v1358, 8
      %v1441 = vpop.permute.xlu0 %1440
      %1442 = vrot.lane.b32.xlu0 %v1359, 8
      %v1443 = vpop.permute.xlu0 %1442
      %1444 = vrot.lane.b32.xlu0 %v1360, 8
      %v1445 = vpop.permute.xlu0 %1444
      %1446 = vrot.lane.b32.xlu0 %v1361, 8
      %v1447 = vpop.permute.xlu0 %1446
      %1448 = vrot.lane.b32.xlu0 %v1362, 8
      %v1449 = vpop.permute.xlu0 %1448
      %1450 = vrot.lane.b32.xlu0 %v1363, 8
      %v1451 = vpop.permute.xlu0 %1450
      %1452 = vrot.lane.b32.xlu0 %v1364, 8
      %v1453 = vpop.permute.xlu0 %1452
      %1454 = vrot.lane.b32.xlu0 %v1365, 8
      %v1455 = vpop.permute.xlu0 %1454
      %1456 = vrot.lane.b32.xlu0 %v1366, 8
      %v1457 = vpop.permute.xlu0 %1456
      %1458 = vrot.lane.b32.xlu0 %v1367, 8
      %v1459 = vpop.permute.xlu0 %1458
      %1460 = vrot.lane.b32.xlu0 %v1368, 8
      %v1461 = vpop.permute.xlu0 %1460
      %1462 = vrot.lane.b32.xlu0 %v1369, 8
      %v1463 = vpop.permute.xlu0 %1462
      %1464 = vrot.lane.b32.xlu0 %v1370, 8
      %v1465 = vpop.permute.xlu0 %1464
      %1466 = vrot.lane.b32.xlu0 %v1371, 8
      %v1467 = vpop.permute.xlu0 %1466
      %vm1468 = vcmask 31744
      %v1471 = vsel %vm1468, %v1324, %v1389
      %v1474 = vsel %vm1468, %v1325, %v1391
      %v1477 = vsel %vm1468, %v1326, %v1393
      %v1480 = vsel %vm1468, %v1327, %v1395
      %v1483 = vsel %vm1468, %v1328, %v1397
      %v1486 = vsel %vm1468, %v1329, %v1399
      %v1489 = vsel %vm1468, %v1330, %v1401
      %v1492 = vsel %vm1468, %v1331, %v1403
      %v1495 = vsel %vm1468, %v1332, %v1405
      %v1498 = vsel %vm1468, %v1333, %v1407
      %v1501 = vsel %vm1468, %v1334, %v1409
      %v1504 = vsel %vm1468, %v1335, %v1411
      %v1507 = vsel %vm1468, %v1336, %v1413
      %v1510 = vsel %vm1468, %v1337, %v1415
      %v1513 = vsel %vm1468, %v1338, %v1417
      %v1516 = vsel %vm1468, %v1339, %v1419
      %vm1517 = vcmask 64512
      %v1519 = vsel %vm1517, %v1471, %v1437
      %v1521 = vsel %vm1517, %v1474, %v1439
      %v1523 = vsel %vm1517, %v1477, %v1441
      %v1525 = vsel %vm1517, %v1480, %v1443
      %v1527 = vsel %vm1517, %v1483, %v1445
      %v1529 = vsel %vm1517, %v1486, %v1447
      %v1531 = vsel %vm1517, %v1489, %v1449
      %v1533 = vsel %vm1517, %v1492, %v1451
      %v1535 = vsel %vm1517, %v1495, %v1453
      %v1537 = vsel %vm1517, %v1498, %v1455
      %v1539 = vsel %vm1517, %v1501, %v1457
      %v1541 = vsel %vm1517, %v1504, %v1459
      %v1543 = vsel %vm1517, %v1507, %v1461
      %v1545 = vsel %vm1517, %v1510, %v1463
      %v1547 = vsel %vm1517, %v1513, %v1465
      %v1549 = vsel %vm1517, %v1516, %v1467
      %v1550 = vld [vmem:[%s2] sm:$0xf]
      %v1551 = vld [vmem:[%s2 + $0x4] sm:$0x3]
      %v1554 = vunpack.c.l.b16 %v1550
      %v1555 = vunpack.c.l.b16 %v1551
      %v1556 = vpack.c.b16 %v1555, %v1554
      %vm1557 = vcmask 97280
      %v1558 = vsel %vm1557, %v1519, 0
      %v1560 = vsel %vm1557, %v1521, 0
      %v1562 = vsel %vm1557, %v1523, 0
      %v1564 = vsel %vm1557, %v1525, 0
      %v1566 = vsel %vm1557, %v1527, 0
      %v1568 = vsel %vm1557, %v1529, 0
      %v1570 = vsel %vm1557, %v1531, 0
      %v1572 = vsel %vm1557, %v1533, 0
      %v1574 = vsel %vm1557, %v1535, 0
      %v1576 = vsel %vm1557, %v1537, 0
      %v1578 = vsel %vm1557, %v1539, 0
      %v1580 = vsel %vm1557, %v1541, 0
      %v1582 = vsel %vm1557, %v1543, 0
      %v1584 = vsel %vm1557, %v1545, 0
      %v1586 = vsel %vm1557, %v1547, 0
      %v1588 = vsel %vm1557, %v1549, 0
      %vm1590 = vcmask 1045504
      %v1592 = vsel %vm1590, %v1556, 0
      %1594 = vmatprep.subr.bf16.mxu0 0
      %1595 = vmatpush1.bf16.msra.mxu0 %v1592
      %1596 = vmatprep.subr.bf16.mxu0 0
      %1597 = vmatpush1.bf16.msra.mxu0 0
      %1598 = vmatprep.subr.bf16.mxu0 0
      %1599 = vmatpush1.bf16.msra.mxu0 0
      %1600 = vmatprep.subr.bf16.mxu0 0
      %1601 = vmatpush1.bf16.msra.mxu0 0
      %1602 = vmatprep.subr.bf16.mxu0 0
      %1603 = vmatpush1.bf16.msra.mxu0 0
      %1604 = vmatprep.subr.bf16.mxu0 0
      %1605 = vmatpush1.bf16.msra.mxu0 0
      %1606 = vmatprep.subr.bf16.mxu0 0
      %1607 = vmatpush1.bf16.msra.mxu0 0
      %1608 = vmatprep.subr.bf16.mxu0 0
      %1609 = vmatpush1.bf16.msra.mxu0 0
      %1610 = vmatprep.subr.bf16.mxu0 0
      %1611 = vmatpush1.bf16.msra.mxu0 0
      %1612 = vmatprep.subr.bf16.mxu0 0
      %1613 = vmatpush1.bf16.msra.mxu0 0
      %1614 = vmatprep.subr.bf16.mxu0 0
      %1615 = vmatpush1.bf16.msra.mxu0 0
      %1616 = vmatprep.subr.bf16.mxu0 0
      %1617 = vmatpush1.bf16.msra.mxu0 0
      %1618 = vmatprep.subr.bf16.mxu0 0
      %1619 = vmatpush1.bf16.msra.mxu0 0
      %1620 = vmatprep.subr.bf16.mxu0 0
      %1621 = vmatpush1.bf16.msra.mxu0 0
      %1622 = vmatprep.subr.bf16.mxu0 0
      %1623 = vmatpush1.bf16.msra.mxu0 0
      %1624 = vmatprep.subr.bf16.mxu0 0
      %1625 = vmatpush1.bf16.msra.mxu0 0
      %1626 = vmatprep.mubr.bf16.mxu0 0
      %1627 = vmatmul.mubr.bf16.gmra.mrb[0].mxu0 %v1558
      %v1628 = vpop.f32.mrb[0].mxu0
      %v1629 = vadd.f32 0.0, %v1628
      %v1630 = vpop.f32.mrb[0].mxu0
      %v1631 = vpop.f32.mrb[0].mxu0
      %v1632 = vadd.f32 0.0, %v1631
      %v1633 = vpop.f32.mrb[0].mxu0
      %1634 = vmatprep.mubr.bf16.mxu0 0
      %1635 = vmatmul.mubr.bf16.gmra.mrb[0].mxu0 %v1560
      %v1636 = vpop.f32.mrb[0].mxu0
      %v1637 = vadd.f32 0.0, %v1636
      %v1638 = vpop.f32.mrb[0].mxu0
      %v1639 = vpop.f32.mrb[0].mxu0
      %v1640 = vadd.f32 0.0, %v1639
      %v1641 = vpop.f32.mrb[0].mxu0
      %1642 = vmatprep.mubr.bf16.mxu0 0
      %1643 = vmatmul.mubr.bf16.gmra.mrb[0].mxu0 %v1562
      %v1644 = vpop.f32.mrb[0].mxu0
      %v1645 = vadd.f32 0.0, %v1644
      %v1646 = vpop.f32.mrb[0].mxu0
      %v1647 = vpop.f32.mrb[0].mxu0
      %v1648 = vadd.f32 0.0, %v1647
      %v1649 = vpop.f32.mrb[0].mxu0
      %1650 = vmatprep.mubr.bf16.mxu0 0
      %1651 = vmatmul.mubr.bf16.gmra.mrb[0].mxu0 %v1564
      %v1652 = vpop.f32.mrb[0].mxu0
      %v1653 = vadd.f32 0.0, %v1652
      %v1654 = vpop.f32.mrb[0].mxu0
      %v1655 = vpop.f32.mrb[0].mxu0
      %v1656 = vadd.f32 0.0, %v1655
      %v1657 = vpop.f32.mrb[0].mxu0
      %1658 = vmatprep.mubr.bf16.mxu0 0
      %1659 = vmatmul.mubr.bf16.gmra.mrb[0].mxu0 %v1566
      %v1660 = vpop.f32.mrb[0].mxu0
      %v1661 = vadd.f32 0.0, %v1660
      %v1662 = vpop.f32.mrb[0].mxu0
      %v1663 = vpop.f32.mrb[0].mxu0
      %v1664 = vadd.f32 0.0, %v1663
      %v1665 = vpop.f32.mrb[0].mxu0
      %1666 = vmatprep.mubr.bf16.mxu0 0
      %1667 = vmatmul.mubr.bf16.gmra.mrb[0].mxu0 %v1568
      %v1668 = vpop.f32.mrb[0].mxu0
      %v1669 = vadd.f32 0.0, %v1668
      %v1670 = vpop.f32.mrb[0].mxu0
      %v1671 = vpop.f32.mrb[0].mxu0
      %v1672 = vadd.f32 0.0, %v1671
      %v1673 = vpop.f32.mrb[0].mxu0
      %1674 = vmatprep.mubr.bf16.mxu0 0
      %1675 = vmatmul.mubr.bf16.gmra.mrb[0].mxu0 %v1570
      %v1676 = vpop.f32.mrb[0].mxu0
      %v1677 = vadd.f32 0.0, %v1676
      %v1678 = vpop.f32.mrb[0].mxu0
      %v1679 = vpop.f32.mrb[0].mxu0
      %v1680 = vadd.f32 0.0, %v1679
      %v1681 = vpop.f32.mrb[0].mxu0
      %1682 = vmatprep.mubr.bf16.mxu0 0
      %1683 = vmatmul.mubr.bf16.gmra.mrb[0].mxu0 %v1572
      %v1684 = vpop.f32.mrb[0].mxu0
      %v1685 = vadd.f32 0.0, %v1684
      %v1686 = vpop.f32.mrb[0].mxu0
      %v1687 = vpop.f32.mrb[0].mxu0
      %v1688 = vadd.f32 0.0, %v1687
      %v1689 = vpop.f32.mrb[0].mxu0
      %1690 = vmatprep.mubr.bf16.mxu0 0
      %1691 = vmatmul.mubr.bf16.gmra.mrb[0].mxu0 %v1574
      %v1692 = vpop.f32.mrb[0].mxu0
      %v1693 = vadd.f32 0.0, %v1692
      %v1694 = vpop.f32.mrb[0].mxu0
      %v1695 = vpop.f32.mrb[0].mxu0
      %v1696 = vadd.f32 0.0, %v1695
      %v1697 = vpop.f32.mrb[0].mxu0
      %1698 = vmatprep.mubr.bf16.mxu0 0
      %1699 = vmatmul.mubr.bf16.gmra.mrb[0].mxu0 %v1576
      %v1700 = vpop.f32.mrb[0].mxu0
      %v1701 = vadd.f32 0.0, %v1700
      %v1702 = vpop.f32.mrb[0].mxu0
      %v1703 = vpop.f32.mrb[0].mxu0
      %v1704 = vadd.f32 0.0, %v1703
      %v1705 = vpop.f32.mrb[0].mxu0
      %1706 = vmatprep.mubr.bf16.mxu0 0
      %1707 = vmatmul.mubr.bf16.gmra.mrb[0].mxu0 %v1578
      %v1708 = vpop.f32.mrb[0].mxu0
      %v1709 = vadd.f32 0.0, %v1708
      %v1710 = vpop.f32.mrb[0].mxu0
      %v1711 = vpop.f32.mrb[0].mxu0
      %v1712 = vadd.f32 0.0, %v1711
      %v1713 = vpop.f32.mrb[0].mxu0
      %1714 = vmatprep.mubr.bf16.mxu0 0
      %1715 = vmatmul.mubr.bf16.gmra.mrb[0].mxu0 %v1580
      %v1716 = vpop.f32.mrb[0].mxu0
      %v1717 = vadd.f32 0.0, %v1716
      %v1718 = vpop.f32.mrb[0].mxu0
      %v1719 = vpop.f32.mrb[0].mxu0
      %v1720 = vadd.f32 0.0, %v1719
      %v1721 = vpop.f32.mrb[0].mxu0
      %1722 = vmatprep.mubr.bf16.mxu0 0
      %1723 = vmatmul.mubr.bf16.gmra.mrb[0].mxu0 %v1582
      %v1724 = vpop.f32.mrb[0].mxu0
      %v1725 = vadd.f32 0.0, %v1724
      %v1726 = vpop.f32.mrb[0].mxu0
      %v1727 = vpop.f32.mrb[0].mxu0
      %v1728 = vadd.f32 0.0, %v1727
      %v1729 = vpop.f32.mrb[0].mxu0
      %1730 = vmatprep.mubr.bf16.mxu0 0
      %1731 = vmatmul.mubr.bf16.gmra.mrb[0].mxu0 %v1584
      %v1732 = vpop.f32.mrb[0].mxu0
      %v1733 = vadd.f32 0.0, %v1732
      %v1734 = vpop.f32.mrb[0].mxu0
      %v1735 = vpop.f32.mrb[0].mxu0
      %v1736 = vadd.f32 0.0, %v1735
      %v1737 = vpop.f32.mrb[0].mxu0
      %1738 = vmatprep.mubr.bf16.mxu0 0
      %1739 = vmatmul.mubr.bf16.gmra.mrb[0].mxu0 %v1586
      %v1740 = vpop.f32.mrb[0].mxu0
      %v1741 = vadd.f32 0.0, %v1740
      %v1742 = vpop.f32.mrb[0].mxu0
      %v1743 = vpop.f32.mrb[0].mxu0
      %v1744 = vadd.f32 0.0, %v1743
      %v1745 = vpop.f32.mrb[0].mxu0
      %1746 = vmatprep.mubr.bf16.mxu0 0
      %1747 = vmatmul.mubr.bf16.gmra.mrb[0].mxu0 %v1588
      %v1748 = vpop.f32.mrb[0].mxu0
      %v1749 = vadd.f32 0.0, %v1748
      %v1750 = vpop.f32.mrb[0].mxu0
      %v1751 = vpop.f32.mrb[0].mxu0
      %v1752 = vadd.f32 0.0, %v1751
      %v1753 = vpop.f32.mrb[0].mxu0
      %1754 = vdwg.mxu0
      %s1755 = scalar_lea.vmem %s2, 8
      %v1756 = vld [vmem:[%s1755] sm:$0xf]
      %v1757 = vld [vmem:[%s1755 + $0x4] sm:$0x3]
      %s1758 = scalar_lea.vmem %s2, 16
      %v1759 = vld [vmem:[%s1758] sm:$0xf]
      %v1760 = vld [vmem:[%s1758 + $0x4] sm:$0x3]
      %v1763 = vunpack.c.l.b16 %v1759
      %v1764 = vunpack.c.l.b16 %v1760
      %v1765 = vpack.c.b16 %v1764, %v1763
      %v1767 = vsel %vm1590, %v1765, 0
      %1769 = vmatprep.subr.bf16.mxu0 0
      %1770 = vmatpush1.bf16.msra.mxu0 %v1767
      %1771 = vmatprep.subr.bf16.mxu0 0
      %1772 = vmatpush1.bf16.msra.mxu0 0
      %1773 = vmatprep.subr.bf16.mxu0 0
      %1774 = vmatpush1.bf16.msra.mxu0 0
      %1775 = vmatprep.subr.bf16.mxu0 0
      %1776 = vmatpush1.bf16.msra.mxu0 0
      %1777 = vmatprep.subr.bf16.mxu0 0
      %1778 = vmatpush1.bf16.msra.mxu0 0
      %1779 = vmatprep.subr.bf16.mxu0 0
      %1780 = vmatpush1.bf16.msra.mxu0 0
      %1781 = vmatprep.subr.bf16.mxu0 0
      %1782 = vmatpush1.bf16.msra.mxu0 0
      %1783 = vmatprep.subr.bf16.mxu0 0
      %1784 = vmatpush1.bf16.msra.mxu0 0
      %1785 = vmatprep.subr.bf16.mxu0 0
      %1786 = vmatpush1.bf16.msra.mxu0 0
      %1787 = vmatprep.subr.bf16.mxu0 0
      %1788 = vmatpush1.bf16.msra.mxu0 0
      %1789 = vmatprep.subr.bf16.mxu0 0
      %1790 = vmatpush1.bf16.msra.mxu0 0
      %1791 = vmatprep.subr.bf16.mxu0 0
      %1792 = vmatpush1.bf16.msra.mxu0 0
      %1793 = vmatprep.subr.bf16.mxu0 0
      %1794 = vmatpush1.bf16.msra.mxu0 0
      %1795 = vmatprep.subr.bf16.mxu0 0
      %1796 = vmatpush1.bf16.msra.mxu0 0
      %1797 = vmatprep.subr.bf16.mxu0 0
      %1798 = vmatpush1.bf16.msra.mxu0 0
      %1799 = vmatprep.subr.bf16.mxu0 0
      %1800 = vmatpush1.bf16.msra.mxu0 0
      %1801 = vmatprep.mubr.bf16.mxu0 0
      %1802 = vmatmul.mubr.bf16.gmra.mrb[0].mxu0 %v1558
      %v1803 = vpop.f32.mrb[0].mxu0
      %v1804 = vadd.f32 0.0, %v1803
      %v1805 = vpop.f32.mrb[0].mxu0
      %v1806 = vpop.f32.mrb[0].mxu0
      %v1807 = vadd.f32 0.0, %v1806
      %v1808 = vpop.f32.mrb[0].mxu0
      %1809 = vmatprep.mubr.bf16.mxu0 0
      %1810 = vmatmul.mubr.bf16.gmra.mrb[0].mxu0 %v1560
      %v1811 = vpop.f32.mrb[0].mxu0
      %v1812 = vadd.f32 0.0, %v1811
      %v1813 = vpop.f32.mrb[0].mxu0
      %v1814 = vpop.f32.mrb[0].mxu0
      %v1815 = vadd.f32 0.0, %v1814
      %v1816 = vpop.f32.mrb[0].mxu0
      %1817 = vmatprep.mubr.bf16.mxu0 0
      %1818 = vmatmul.mubr.bf16.gmra.mrb[0].mxu0 %v1562
      %v1819 = vpop.f32.mrb[0].mxu0
      %v1820 = vadd.f32 0.0, %v1819
      %v1821 = vpop.f32.mrb[0].mxu0
      %v1822 = vpop.f32.mrb[0].mxu0
      %v1823 = vadd.f32 0.0, %v1822
      %v1824 = vpop.f32.mrb[0].mxu0
      %1825 = vmatprep.mubr.bf16.mxu0 0
      %1826 = vmatmul.mubr.bf16.gmra.mrb[0].mxu0 %v1564
      %v1827 = vpop.f32.mrb[0].mxu0
      %v1828 = vadd.f32 0.0, %v1827
      %v1829 = vpop.f32.mrb[0].mxu0
      %v1830 = vpop.f32.mrb[0].mxu0
      %v1831 = vadd.f32 0.0, %v1830
      %v1832 = vpop.f32.mrb[0].mxu0
      %1833 = vmatprep.mubr.bf16.mxu0 0
      %1834 = vmatmul.mubr.bf16.gmra.mrb[0].mxu0 %v1566
      %v1835 = vpop.f32.mrb[0].mxu0
      %v1836 = vadd.f32 0.0, %v1835
      %v1837 = vpop.f32.mrb[0].mxu0
      %v1838 = vpop.f32.mrb[0].mxu0
      %v1839 = vadd.f32 0.0, %v1838
      %v1840 = vpop.f32.mrb[0].mxu0
      %1841 = vmatprep.mubr.bf16.mxu0 0
      %1842 = vmatmul.mubr.bf16.gmra.mrb[0].mxu0 %v1568
      %v1843 = vpop.f32.mrb[0].mxu0
      %v1844 = vadd.f32 0.0, %v1843
      %v1845 = vpop.f32.mrb[0].mxu0
      %v1846 = vpop.f32.mrb[0].mxu0
      %v1847 = vadd.f32 0.0, %v1846
      %v1848 = vpop.f32.mrb[0].mxu0
      %1849 = vmatprep.mubr.bf16.mxu0 0
      %1850 = vmatmul.mubr.bf16.gmra.mrb[0].mxu0 %v1570
      %v1851 = vpop.f32.mrb[0].mxu0
      %v1852 = vadd.f32 0.0, %v1851
      %v1853 = vpop.f32.mrb[0].mxu0
      %v1854 = vpop.f32.mrb[0].mxu0
      %v1855 = vadd.f32 0.0, %v1854
      %v1856 = vpop.f32.mrb[0].mxu0
      %1857 = vmatprep.mubr.bf16.mxu0 0
      %1858 = vmatmul.mubr.bf16.gmra.mrb[0].mxu0 %v1572
      %v1859 = vpop.f32.mrb[0].mxu0
      %v1860 = vadd.f32 0.0, %v1859
      %v1861 = vpop.f32.mrb[0].mxu0
      %v1862 = vpop.f32.mrb[0].mxu0
      %v1863 = vadd.f32 0.0, %v1862
      %v1864 = vpop.f32.mrb[0].mxu0
      %1865 = vmatprep.mubr.bf16.mxu0 0
      %1866 = vmatmul.mubr.bf16.gmra.mrb[0].mxu0 %v1574
      %v1867 = vpop.f32.mrb[0].mxu0
      %v1868 = vadd.f32 0.0, %v1867
      %v1869 = vpop.f32.mrb[0].mxu0
      %v1870 = vpop.f32.mrb[0].mxu0
      %v1871 = vadd.f32 0.0, %v1870
      %v1872 = vpop.f32.mrb[0].mxu0
      %1873 = vmatprep.mubr.bf16.mxu0 0
      %1874 = vmatmul.mubr.bf16.gmra.mrb[0].mxu0 %v1576
      %v1875 = vpop.f32.mrb[0].mxu0
      %v1876 = vadd.f32 0.0, %v1875
      %v1877 = vpop.f32.mrb[0].mxu0
      %v1878 = vpop.f32.mrb[0].mxu0
      %v1879 = vadd.f32 0.0, %v1878
      %v1880 = vpop.f32.mrb[0].mxu0
      %1881 = vmatprep.mubr.bf16.mxu0 0
      %1882 = vmatmul.mubr.bf16.gmra.mrb[0].mxu0 %v1578
      %v1883 = vpop.f32.mrb[0].mxu0
      %v1884 = vadd.f32 0.0, %v1883
      %v1885 = vpop.f32.mrb[0].mxu0
      %v1886 = vpop.f32.mrb[0].mxu0
      %v1887 = vadd.f32 0.0, %v1886
      %v1888 = vpop.f32.mrb[0].mxu0
      %1889 = vmatprep.mubr.bf16.mxu0 0
      %1890 = vmatmul.mubr.bf16.gmra.mrb[0].mxu0 %v1580
      %v1891 = vpop.f32.mrb[0].mxu0
      %v1892 = vadd.f32 0.0, %v1891
      %v1893 = vpop.f32.mrb[0].mxu0
      %v1894 = vpop.f32.mrb[0].mxu0
      %v1895 = vadd.f32 0.0, %v1894
      %v1896 = vpop.f32.mrb[0].mxu0
      %1897 = vmatprep.mubr.bf16.mxu0 0
      %1898 = vmatmul.mubr.bf16.gmra.mrb[0].mxu0 %v1582
      %v1899 = vpop.f32.mrb[0].mxu0
      %v1900 = vadd.f32 0.0, %v1899
      %v1901 = vpop.f32.mrb[0].mxu0
      %v1902 = vpop.f32.mrb[0].mxu0
      %v1903 = vadd.f32 0.0, %v1902
      %v1904 = vpop.f32.mrb[0].mxu0
      %1905 = vmatprep.mubr.bf16.mxu0 0
      %1906 = vmatmul.mubr.bf16.gmra.mrb[0].mxu0 %v1584
      %v1907 = vpop.f32.mrb[0].mxu0
      %v1908 = vadd.f32 0.0, %v1907
      %v1909 = vpop.f32.mrb[0].mxu0
      %v1910 = vpop.f32.mrb[0].mxu0
      %v1911 = vadd.f32 0.0, %v1910
      %v1912 = vpop.f32.mrb[0].mxu0
      %1913 = vmatprep.mubr.bf16.mxu0 0
      %1914 = vmatmul.mubr.bf16.gmra.mrb[0].mxu0 %v1586
      %v1915 = vpop.f32.mrb[0].mxu0
      %v1916 = vadd.f32 0.0, %v1915
      %v1917 = vpop.f32.mrb[0].mxu0
      %v1918 = vpop.f32.mrb[0].mxu0
      %v1919 = vadd.f32 0.0, %v1918
      %v1920 = vpop.f32.mrb[0].mxu0
      %1921 = vmatprep.mubr.bf16.mxu0 0
      %1922 = vmatmul.mubr.bf16.gmra.mrb[0].mxu0 %v1588
      %v1923 = vpop.f32.mrb[0].mxu0
      %v1924 = vadd.f32 0.0, %v1923
      %v1925 = vpop.f32.mrb[0].mxu0
      %v1926 = vpop.f32.mrb[0].mxu0
      %v1927 = vadd.f32 0.0, %v1926
      %v1928 = vpop.f32.mrb[0].mxu0
      %1929 = vdwg.mxu0
      %vm1930 = vcmp.lt.s32.totalorder %v650, 16
      %vm1931 = vcmp.lt.s32.totalorder %v651, 16
      %vm1932 = vcmp.lt.s32.totalorder %v652, 16
      %vm1933 = vcmp.lt.s32.totalorder %v653, 16
      %vm1934 = vcmp.lt.s32.totalorder %v654, 16
      %vm1935 = vcmp.lt.s32.totalorder %v655, 16
      %vm1936 = vcmp.lt.s32.totalorder %v656, 16
      %vm1937 = vcmp.lt.s32.totalorder %v657, 16
      %vm1938 = vcmp.lt.s32.totalorder %v658, 16
      %vm1939 = vcmp.lt.s32.totalorder %v659, 16
      %vm1940 = vcmp.lt.s32.totalorder %v660, 16
      %vm1941 = vcmp.lt.s32.totalorder %v661, 16
      %vm1942 = vcmp.lt.s32.totalorder %v662, 16
      %vm1943 = vcmp.lt.s32.totalorder %v663, 16
      %vm1944 = vcmp.lt.s32.totalorder %v664, 16
      %vm1945 = vcmp.lt.s32.totalorder %v665, 16
      %vm1946 = vcmp.lt.s32.totalorder %v666, 16
      %vm1947 = vcmp.lt.s32.totalorder %v667, 16
      %vm1948 = vcmp.lt.s32.totalorder %v668, 16
      %vm1949 = vcmp.lt.s32.totalorder %v669, 16
      %vm1950 = vcmp.lt.s32.totalorder %v670, 16
      %vm1951 = vcmp.lt.s32.totalorder %v671, 16
      %vm1952 = vcmp.lt.s32.totalorder %v672, 16
      %vm1953 = vcmp.lt.s32.totalorder %v673, 16
      %vm1954 = vcmp.lt.s32.totalorder %v674, 16
      %vm1955 = vcmp.lt.s32.totalorder %v675, 16
      %vm1956 = vcmp.lt.s32.totalorder %v676, 16
      %vm1957 = vcmp.lt.s32.totalorder %v677, 16
      %vm1958 = vcmp.lt.s32.totalorder %v678, 16
      %vm1959 = vcmp.lt.s32.totalorder %v679, 16
      %vm1960 = vcmp.lt.s32.totalorder %v680, 16
      %vm1961 = vcmp.lt.s32.totalorder %v681, 16
      %v1962 = vsel %vm1930, 0.0, %v1749
      %v1963 = vsel %vm1931, 0.0, %v1752
      %v1964 = vsel %vm1932, 0.0, %v1629
      %v1965 = vsel %vm1933, 0.0, %v1632
      %v1966 = vsel %vm1934, 0.0, %v1637
      %v1967 = vsel %vm1935, 0.0, %v1640
      %v1968 = vsel %vm1936, 0.0, %v1645
      %v1969 = vsel %vm1937, 0.0, %v1648
      %v1970 = vsel %vm1938, 0.0, %v1653
      %v1971 = vsel %vm1939, 0.0, %v1656
      %v1972 = vsel %vm1940, 0.0, %v1661
      %v1973 = vsel %vm1941, 0.0, %v1664
      %v1974 = vsel %vm1942, 0.0, %v1669
      %v1975 = vsel %vm1943, 0.0, %v1672
      %v1976 = vsel %vm1944, 0.0, %v1677
      %v1977 = vsel %vm1945, 0.0, %v1680
      %v1978 = vsel %vm1946, 0.0, %v1685
      %v1979 = vsel %vm1947, 0.0, %v1688
      %v1980 = vsel %vm1948, 0.0, %v1693
      %v1981 = vsel %vm1949, 0.0, %v1696
      %v1982 = vsel %vm1950, 0.0, %v1701
      %v1983 = vsel %vm1951, 0.0, %v1704
      %v1984 = vsel %vm1952, 0.0, %v1709
      %v1985 = vsel %vm1953, 0.0, %v1712
      %v1986 = vsel %vm1954, 0.0, %v1717
      %v1987 = vsel %vm1955, 0.0, %v1720
      %v1988 = vsel %vm1956, 0.0, %v1725
      %v1989 = vsel %vm1957, 0.0, %v1728
      %v1990 = vsel %vm1958, 0.0, %v1733
      %v1991 = vsel %vm1959, 0.0, %v1736
      %v1992 = vsel %vm1960, 0.0, %v1741
      %v1993 = vsel %vm1961, 0.0, %v1744
      %vm1994 = vcmp.ge.s32.totalorder %v650, 240
      %vm1995 = vcmp.ge.s32.totalorder %v651, 240
      %vm1996 = vcmp.ge.s32.totalorder %v652, 240
      %vm1997 = vcmp.ge.s32.totalorder %v653, 240
      %vm1998 = vcmp.ge.s32.totalorder %v654, 240
      %vm1999 = vcmp.ge.s32.totalorder %v655, 240
      %vm2000 = vcmp.ge.s32.totalorder %v656, 240
      %vm2001 = vcmp.ge.s32.totalorder %v657, 240
      %vm2002 = vcmp.ge.s32.totalorder %v658, 240
      %vm2003 = vcmp.ge.s32.totalorder %v659, 240
      %vm2004 = vcmp.ge.s32.totalorder %v660, 240
      %vm2005 = vcmp.ge.s32.totalorder %v661, 240
      %vm2006 = vcmp.ge.s32.totalorder %v662, 240
      %vm2007 = vcmp.ge.s32.totalorder %v663, 240
      %vm2008 = vcmp.ge.s32.totalorder %v664, 240
      %vm2009 = vcmp.ge.s32.totalorder %v665, 240
      %vm2010 = vcmp.ge.s32.totalorder %v666, 240
      %vm2011 = vcmp.ge.s32.totalorder %v667, 240
      %vm2012 = vcmp.ge.s32.totalorder %v668, 240
      %vm2013 = vcmp.ge.s32.totalorder %v669, 240
      %vm2014 = vcmp.ge.s32.totalorder %v670, 240
      %vm2015 = vcmp.ge.s32.totalorder %v671, 240
      %vm2016 = vcmp.ge.s32.totalorder %v672, 240
      %vm2017 = vcmp.ge.s32.totalorder %v673, 240
      %vm2018 = vcmp.ge.s32.totalorder %v674, 240
      %vm2019 = vcmp.ge.s32.totalorder %v675, 240
      %vm2020 = vcmp.ge.s32.totalorder %v676, 240
      %vm2021 = vcmp.ge.s32.totalorder %v677, 240
      %vm2022 = vcmp.ge.s32.totalorder %v678, 240
      %vm2023 = vcmp.ge.s32.totalorder %v679, 240
      %vm2024 = vcmp.ge.s32.totalorder %v680, 240
      %vm2025 = vcmp.ge.s32.totalorder %v681, 240
      %v2026 = vsel %vm1994, 0.0, %v1812
      %v2027 = vsel %vm1995, 0.0, %v1815
      %v2028 = vsel %vm1996, 0.0, %v1820
      %v2029 = vsel %vm1997, 0.0, %v1823
      %v2030 = vsel %vm1998, 0.0, %v1828
      %v2031 = vsel %vm1999, 0.0, %v1831
      %v2032 = vsel %vm2000, 0.0, %v1836
      %v2033 = vsel %vm2001, 0.0, %v1839
      %v2034 = vsel %vm2002, 0.0, %v1844
      %v2035 = vsel %vm2003, 0.0, %v1847
      %v2036 = vsel %vm2004, 0.0, %v1852
      %v2037 = vsel %vm2005, 0.0, %v1855
      %v2038 = vsel %vm2006, 0.0, %v1860
      %v2039 = vsel %vm2007, 0.0, %v1863
      %v2040 = vsel %vm2008, 0.0, %v1868
      %v2041 = vsel %vm2009, 0.0, %v1871
      %v2042 = vsel %vm2010, 0.0, %v1876
      %v2043 = vsel %vm2011, 0.0, %v1879
      %v2044 = vsel %vm2012, 0.0, %v1884
      %v2045 = vsel %vm2013, 0.0, %v1887
      %v2046 = vsel %vm2014, 0.0, %v1892
      %v2047 = vsel %vm2015, 0.0, %v1895
      %v2048 = vsel %vm2016, 0.0, %v1900
      %v2049 = vsel %vm2017, 0.0, %v1903
      %v2050 = vsel %vm2018, 0.0, %v1908
      %v2051 = vsel %vm2019, 0.0, %v1911
      %v2052 = vsel %vm2020, 0.0, %v1916
      %v2053 = vsel %vm2021, 0.0, %v1919
      %v2054 = vsel %vm2022, 0.0, %v1924
      %v2055 = vsel %vm2023, 0.0, %v1927
      %v2056 = vsel %vm2024, 0.0, %v1804
      %v2057 = vsel %vm2025, 0.0, %v1807
      %v2060 = vunpack.c.l.b16 %v1756
      %v2061 = vunpack.c.l.b16 %v1757
      %v2062 = vpack.c.b16 %v2061, %v2060
      %v2064 = vsel %vm1590, %v2062, 0
      %2066 = vmatprep.subr.bf16.mxu0 0
      %2067 = vmatpush1.bf16.msra.mxu0 %v2064
      %2068 = vmatprep.subr.bf16.mxu0 0
      %2069 = vmatpush1.bf16.msra.mxu0 0
      %2070 = vmatprep.subr.bf16.mxu0 0
      %2071 = vmatpush1.bf16.msra.mxu0 0
      %2072 = vmatprep.subr.bf16.mxu0 0
      %2073 = vmatpush1.bf16.msra.mxu0 0
      %2074 = vmatprep.subr.bf16.mxu0 0
      %2075 = vmatpush1.bf16.msra.mxu0 0
      %2076 = vmatprep.subr.bf16.mxu0 0
      %2077 = vmatpush1.bf16.msra.mxu0 0
      %2078 = vmatprep.subr.bf16.mxu0 0
      %2079 = vmatpush1.bf16.msra.mxu0 0
      %2080 = vmatprep.subr.bf16.mxu0 0
      %2081 = vmatpush1.bf16.msra.mxu0 0
      %2082 = vmatprep.subr.bf16.mxu0 0
      %2083 = vmatpush1.bf16.msra.mxu0 0
      %2084 = vmatprep.subr.bf16.mxu0 0
      %2085 = vmatpush1.bf16.msra.mxu0 0
      %2086 = vmatprep.subr.bf16.mxu0 0
      %2087 = vmatpush1.bf16.msra.mxu0 0
      %2088 = vmatprep.subr.bf16.mxu0 0
      %2089 = vmatpush1.bf16.msra.mxu0 0
      %2090 = vmatprep.subr.bf16.mxu0 0
      %2091 = vmatpush1.bf16.msra.mxu0 0
      %2092 = vmatprep.subr.bf16.mxu0 0
      %2093 = vmatpush1.bf16.msra.mxu0 0
      %2094 = vmatprep.subr.bf16.mxu0 0
      %2095 = vmatpush1.bf16.msra.mxu0 0
      %2096 = vmatprep.subr.bf16.mxu0 0
      %2097 = vmatpush1.bf16.msra.mxu0 0
      %2098 = vmatprep.mubr.bf16.mxu0 0
      %2099 = vmatmul.mubr.bf16.gmra.mrb[0].mxu0 %v1558
      %v2100 = vpop.f32.mrb[0].mxu0
      %v2101 = vadd.f32 %v1962, %v2100
      %v2102 = vpop.f32.mrb[0].mxu0
      %v2103 = vpop.f32.mrb[0].mxu0
      %v2104 = vadd.f32 %v1963, %v2103
      %v2105 = vpop.f32.mrb[0].mxu0
      %2106 = vmatprep.mubr.bf16.mxu0 0
      %2107 = vmatmul.mubr.bf16.gmra.mrb[0].mxu0 %v1560
      %v2108 = vpop.f32.mrb[0].mxu0
      %v2109 = vadd.f32 %v1964, %v2108
      %v2110 = vpop.f32.mrb[0].mxu0
      %v2111 = vpop.f32.mrb[0].mxu0
      %v2112 = vadd.f32 %v1965, %v2111
      %v2113 = vpop.f32.mrb[0].mxu0
      %2114 = vmatprep.mubr.bf16.mxu0 0
      %2115 = vmatmul.mubr.bf16.gmra.mrb[0].mxu0 %v1562
      %v2116 = vpop.f32.mrb[0].mxu0
      %v2117 = vadd.f32 %v1966, %v2116
      %v2118 = vpop.f32.mrb[0].mxu0
      %v2119 = vpop.f32.mrb[0].mxu0
      %v2120 = vadd.f32 %v1967, %v2119
      %v2121 = vpop.f32.mrb[0].mxu0
      %2122 = vmatprep.mubr.bf16.mxu0 0
      %2123 = vmatmul.mubr.bf16.gmra.mrb[0].mxu0 %v1564
      %v2124 = vpop.f32.mrb[0].mxu0
      %v2125 = vadd.f32 %v1968, %v2124
      %v2126 = vpop.f32.mrb[0].mxu0
      %v2127 = vpop.f32.mrb[0].mxu0
      %v2128 = vadd.f32 %v1969, %v2127
      %v2129 = vpop.f32.mrb[0].mxu0
      %2130 = vmatprep.mubr.bf16.mxu0 0
      %2131 = vmatmul.mubr.bf16.gmra.mrb[0].mxu0 %v1566
      %v2132 = vpop.f32.mrb[0].mxu0
      %v2133 = vadd.f32 %v1970, %v2132
      %v2134 = vpop.f32.mrb[0].mxu0
      %v2135 = vpop.f32.mrb[0].mxu0
      %v2136 = vadd.f32 %v1971, %v2135
      %v2137 = vpop.f32.mrb[0].mxu0
      %2138 = vmatprep.mubr.bf16.mxu0 0
      %2139 = vmatmul.mubr.bf16.gmra.mrb[0].mxu0 %v1568
      %v2140 = vpop.f32.mrb[0].mxu0
      %v2141 = vadd.f32 %v1972, %v2140
      %v2142 = vpop.f32.mrb[0].mxu0
      %v2143 = vpop.f32.mrb[0].mxu0
      %v2144 = vadd.f32 %v1973, %v2143
      %v2145 = vpop.f32.mrb[0].mxu0
      %2146 = vmatprep.mubr.bf16.mxu0 0
      %2147 = vmatmul.mubr.bf16.gmra.mrb[0].mxu0 %v1570
      %v2148 = vpop.f32.mrb[0].mxu0
      %v2149 = vadd.f32 %v1974, %v2148
      %v2150 = vpop.f32.mrb[0].mxu0
      %v2151 = vpop.f32.mrb[0].mxu0
      %v2152 = vadd.f32 %v1975, %v2151
      %v2153 = vpop.f32.mrb[0].mxu0
      %2154 = vmatprep.mubr.bf16.mxu0 0
      %2155 = vmatmul.mubr.bf16.gmra.mrb[0].mxu0 %v1572
      %v2156 = vpop.f32.mrb[0].mxu0
      %v2157 = vadd.f32 %v1976, %v2156
      %v2158 = vpop.f32.mrb[0].mxu0
      %v2159 = vpop.f32.mrb[0].mxu0
      %v2160 = vadd.f32 %v1977, %v2159
      %v2161 = vpop.f32.mrb[0].mxu0
      %2162 = vmatprep.mubr.bf16.mxu0 0
      %2163 = vmatmul.mubr.bf16.gmra.mrb[0].mxu0 %v1574
      %v2164 = vpop.f32.mrb[0].mxu0
      %v2165 = vadd.f32 %v1978, %v2164
      %v2166 = vpop.f32.mrb[0].mxu0
      %v2167 = vpop.f32.mrb[0].mxu0
      %v2168 = vadd.f32 %v1979, %v2167
      %v2169 = vpop.f32.mrb[0].mxu0
      %2170 = vmatprep.mubr.bf16.mxu0 0
      %2171 = vmatmul.mubr.bf16.gmra.mrb[0].mxu0 %v1576
      %v2172 = vpop.f32.mrb[0].mxu0
      %v2173 = vadd.f32 %v1980, %v2172
      %v2174 = vpop.f32.mrb[0].mxu0
      %v2175 = vpop.f32.mrb[0].mxu0
      %v2176 = vadd.f32 %v1981, %v2175
      %v2177 = vpop.f32.mrb[0].mxu0
      %2178 = vmatprep.mubr.bf16.mxu0 0
      %2179 = vmatmul.mubr.bf16.gmra.mrb[0].mxu0 %v1578
      %v2180 = vpop.f32.mrb[0].mxu0
      %v2181 = vadd.f32 %v1982, %v2180
      %v2182 = vpop.f32.mrb[0].mxu0
      %v2183 = vpop.f32.mrb[0].mxu0
      %v2184 = vadd.f32 %v1983, %v2183
      %v2185 = vpop.f32.mrb[0].mxu0
      %2186 = vmatprep.mubr.bf16.mxu0 0
      %2187 = vmatmul.mubr.bf16.gmra.mrb[0].mxu0 %v1580
      %v2188 = vpop.f32.mrb[0].mxu0
      %v2189 = vadd.f32 %v1984, %v2188
      %v2190 = vpop.f32.mrb[0].mxu0
      %v2191 = vpop.f32.mrb[0].mxu0
      %v2192 = vadd.f32 %v1985, %v2191
      %v2193 = vpop.f32.mrb[0].mxu0
      %2194 = vmatprep.mubr.bf16.mxu0 0
      %2195 = vmatmul.mubr.bf16.gmra.mrb[0].mxu0 %v1582
      %v2196 = vpop.f32.mrb[0].mxu0
      %v2197 = vadd.f32 %v1986, %v2196
      %v2198 = vpop.f32.mrb[0].mxu0
      %v2199 = vpop.f32.mrb[0].mxu0
      %v2200 = vadd.f32 %v1987, %v2199
      %v2201 = vpop.f32.mrb[0].mxu0
      %2202 = vmatprep.mubr.bf16.mxu0 0
      %2203 = vmatmul.mubr.bf16.gmra.mrb[0].mxu0 %v1584
      %v2204 = vpop.f32.mrb[0].mxu0
      %v2205 = vadd.f32 %v1988, %v2204
      %v2206 = vpop.f32.mrb[0].mxu0
      %v2207 = vpop.f32.mrb[0].mxu0
      %v2208 = vadd.f32 %v1989, %v2207
      %v2209 = vpop.f32.mrb[0].mxu0
      %2210 = vmatprep.mubr.bf16.mxu0 0
      %2211 = vmatmul.mubr.bf16.gmra.mrb[0].mxu0 %v1586
      %v2212 = vpop.f32.mrb[0].mxu0
      %v2213 = vadd.f32 %v1990, %v2212
      %v2214 = vpop.f32.mrb[0].mxu0
      %v2215 = vpop.f32.mrb[0].mxu0
      %v2216 = vadd.f32 %v1991, %v2215
      %v2217 = vpop.f32.mrb[0].mxu0
      %2218 = vmatprep.mubr.bf16.mxu0 0
      %2219 = vmatmul.mubr.bf16.gmra.mrb[0].mxu0 %v1588
      %v2220 = vpop.f32.mrb[0].mxu0
      %v2221 = vadd.f32 %v1992, %v2220
      %v2222 = vpop.f32.mrb[0].mxu0
      %v2223 = vpop.f32.mrb[0].mxu0
      %v2224 = vadd.f32 %v1993, %v2223
      %v2225 = vpop.f32.mrb[0].mxu0
      %2226 = vdwg.mxu0
      %v2227 = vadd.f32 %v2101, %v2026
      %v2228 = vadd.f32 %v2104, %v2027
      %v2229 = vadd.f32 %v2109, %v2028
      %v2230 = vadd.f32 %v2112, %v2029
      %v2231 = vadd.f32 %v2117, %v2030
      %v2232 = vadd.f32 %v2120, %v2031
      %v2233 = vadd.f32 %v2125, %v2032
      %v2234 = vadd.f32 %v2128, %v2033
      %v2235 = vadd.f32 %v2133, %v2034
      %v2236 = vadd.f32 %v2136, %v2035
      %v2237 = vadd.f32 %v2141, %v2036
      %v2238 = vadd.f32 %v2144, %v2037
      %v2239 = vadd.f32 %v2149, %v2038
      %v2240 = vadd.f32 %v2152, %v2039
      %v2241 = vadd.f32 %v2157, %v2040
      %v2242 = vadd.f32 %v2160, %v2041
      %v2243 = vadd.f32 %v2165, %v2042
      %v2244 = vadd.f32 %v2168, %v2043
      %v2245 = vadd.f32 %v2173, %v2044
      %v2246 = vadd.f32 %v2176, %v2045
      %v2247 = vadd.f32 %v2181, %v2046
      %v2248 = vadd.f32 %v2184, %v2047
      %v2249 = vadd.f32 %v2189, %v2048
      %v2250 = vadd.f32 %v2192, %v2049
      %v2251 = vadd.f32 %v2197, %v2050
      %v2252 = vadd.f32 %v2200, %v2051
      %v2253 = vadd.f32 %v2205, %v2052
      %v2254 = vadd.f32 %v2208, %v2053
      %v2255 = vadd.f32 %v2213, %v2054
      %v2256 = vadd.f32 %v2216, %v2055
      %v2257 = vadd.f32 %v2221, %v2056
      %v2258 = vadd.f32 %v2224, %v2057
      %v2259 = vld [vmem:[%s5] sm:$0x1]
      %v2261 = vlaneseq
      %v2262 = vshrl.u32 %v2261, 7
      %v2263 = vsub.s32 0, %v2262
      %v2264 = vrot.slane %v2259, %v2263
      %v2266 = vadd.f32 %v2227, %v2264
      %v2267 = vadd.f32 %v2228, %v2264
      %v2268 = vadd.f32 %v2229, %v2264
      %v2269 = vadd.f32 %v2230, %v2264
      %v2270 = vadd.f32 %v2231, %v2264
      %v2271 = vadd.f32 %v2232, %v2264
      %v2272 = vadd.f32 %v2233, %v2264
      %v2273 = vadd.f32 %v2234, %v2264
      %v2274 = vadd.f32 %v2235, %v2264
      %v2275 = vadd.f32 %v2236, %v2264
      %v2276 = vadd.f32 %v2237, %v2264
      %v2277 = vadd.f32 %v2238, %v2264
      %v2278 = vadd.f32 %v2239, %v2264
      %v2279 = vadd.f32 %v2240, %v2264
      %v2280 = vadd.f32 %v2241, %v2264
      %v2281 = vadd.f32 %v2242, %v2264
      %v2282 = vadd.f32 %v2243, %v2264
      %v2283 = vadd.f32 %v2244, %v2264
      %v2284 = vadd.f32 %v2245, %v2264
      %v2285 = vadd.f32 %v2246, %v2264
      %v2286 = vadd.f32 %v2247, %v2264
      %v2287 = vadd.f32 %v2248, %v2264
      %v2288 = vadd.f32 %v2249, %v2264
      %v2289 = vadd.f32 %v2250, %v2264
      %v2290 = vadd.f32 %v2251, %v2264
      %v2291 = vadd.f32 %v2252, %v2264
      %v2292 = vadd.f32 %v2253, %v2264
      %v2293 = vadd.f32 %v2254, %v2264
      %v2294 = vadd.f32 %v2255, %v2264
      %v2295 = vadd.f32 %v2256, %v2264
      %v2296 = vadd.f32 %v2257, %v2264
      %v2297 = vadd.f32 %v2258, %v2264
      %v2298 = vmax.f32 %v2266, 0.0
      %v2299 = vmax.f32 %v2267, 0.0
      %v2300 = vmax.f32 %v2268, 0.0
      %v2301 = vmax.f32 %v2269, 0.0
      %v2302 = vmax.f32 %v2270, 0.0
      %v2303 = vmax.f32 %v2271, 0.0
      %v2304 = vmax.f32 %v2272, 0.0
      %v2305 = vmax.f32 %v2273, 0.0
      %v2306 = vmax.f32 %v2274, 0.0
      %v2307 = vmax.f32 %v2275, 0.0
      %v2308 = vmax.f32 %v2276, 0.0
      %v2309 = vmax.f32 %v2277, 0.0
      %v2310 = vmax.f32 %v2278, 0.0
      %v2311 = vmax.f32 %v2279, 0.0
      %v2312 = vmax.f32 %v2280, 0.0
      %v2313 = vmax.f32 %v2281, 0.0
      %v2314 = vmax.f32 %v2282, 0.0
      %v2315 = vmax.f32 %v2283, 0.0
      %v2316 = vmax.f32 %v2284, 0.0
      %v2317 = vmax.f32 %v2285, 0.0
      %v2318 = vmax.f32 %v2286, 0.0
      %v2319 = vmax.f32 %v2287, 0.0
      %v2320 = vmax.f32 %v2288, 0.0
      %v2321 = vmax.f32 %v2289, 0.0
      %v2322 = vmax.f32 %v2290, 0.0
      %v2323 = vmax.f32 %v2291, 0.0
      %v2324 = vmax.f32 %v2292, 0.0
      %v2325 = vmax.f32 %v2293, 0.0
      %v2326 = vmax.f32 %v2294, 0.0
      %v2327 = vmax.f32 %v2295, 0.0
      %v2328 = vmax.f32 %v2296, 0.0
      %v2329 = vmax.f32 %v2297, 0.0
      %v2330 = vpack.c.bf16 %v2299, %v2298
      %v2331 = vpack.c.bf16 %v2301, %v2300
      %v2332 = vpack.c.bf16 %v2303, %v2302
      %v2333 = vpack.c.bf16 %v2305, %v2304
      %v2334 = vpack.c.bf16 %v2307, %v2306
      %v2335 = vpack.c.bf16 %v2309, %v2308
      %v2336 = vpack.c.bf16 %v2311, %v2310
      %v2337 = vpack.c.bf16 %v2313, %v2312
      %v2338 = vpack.c.bf16 %v2315, %v2314
      %v2339 = vpack.c.bf16 %v2317, %v2316
      %v2340 = vpack.c.bf16 %v2319, %v2318
      %v2341 = vpack.c.bf16 %v2321, %v2320
      %v2342 = vpack.c.bf16 %v2323, %v2322
      %v2343 = vpack.c.bf16 %v2325, %v2324
      %v2344 = vpack.c.bf16 %v2327, %v2326
      %v2345 = vpack.c.bf16 %v2329, %v2328
      %v2346 = vld [vmem:[%s3] sm:$0x3]
      %v2347 = vld [vmem:[%s6] sm:$0x1]
      %v2349 = vlaneseq
      %v2350 = vshrl.u32 %v2349, 7
      %v2351 = vsub.s32 0, %v2350
      %v2352 = vrot.slane %v2347, %v2351
      %v2355 = vsel %vm1468, %v2330, 0
      %v2358 = vsel %vm1468, %v2331, 0
      %v2361 = vsel %vm1468, %v2332, 0
      %v2364 = vsel %vm1468, %v2333, 0
      %v2367 = vsel %vm1468, %v2334, 0
      %v2370 = vsel %vm1468, %v2335, 0
      %v2373 = vsel %vm1468, %v2336, 0
      %v2376 = vsel %vm1468, %v2337, 0
      %v2379 = vsel %vm1468, %v2338, 0
      %v2382 = vsel %vm1468, %v2339, 0
      %v2385 = vsel %vm1468, %v2340, 0
      %v2388 = vsel %vm1468, %v2341, 0
      %v2391 = vsel %vm1468, %v2342, 0
      %v2394 = vsel %vm1468, %v2343, 0
      %v2397 = vsel %vm1468, %v2344, 0
      %v2400 = vsel %vm1468, %v2345, 0
      %vm2402 = vcmask 1041408
      %v2404 = vsel %vm2402, %v2346, 0
      %2406 = vmatprep.subr.bf16.mxu0 0
      %2407 = vmatpush1.bf16.msra.mxu0 %v2404
      %2408 = vmatprep.subr.bf16.mxu0 0
      %2409 = vmatpush1.bf16.msra.mxu0 0
      %2410 = vmatprep.subr.bf16.mxu0 0
      %2411 = vmatpush1.bf16.msra.mxu0 0
      %2412 = vmatprep.subr.bf16.mxu0 0
      %2413 = vmatpush1.bf16.msra.mxu0 0
      %2414 = vmatprep.subr.bf16.mxu0 0
      %2415 = vmatpush1.bf16.msra.mxu0 0
      %2416 = vmatprep.subr.bf16.mxu0 0
      %2417 = vmatpush1.bf16.msra.mxu0 0
      %2418 = vmatprep.subr.bf16.mxu0 0
      %2419 = vmatpush1.bf16.msra.mxu0 0
      %2420 = vmatprep.subr.bf16.mxu0 0
      %2421 = vmatpush1.bf16.msra.mxu0 0
      %2422 = vmatprep.subr.bf16.mxu0 0
      %2423 = vmatpush1.bf16.msra.mxu0 0
      %2424 = vmatprep.subr.bf16.mxu0 0
      %2425 = vmatpush1.bf16.msra.mxu0 0
      %2426 = vmatprep.subr.bf16.mxu0 0
      %2427 = vmatpush1.bf16.msra.mxu0 0
      %2428 = vmatprep.subr.bf16.mxu0 0
      %2429 = vmatpush1.bf16.msra.mxu0 0
      %2430 = vmatprep.subr.bf16.mxu0 0
      %2431 = vmatpush1.bf16.msra.mxu0 0
      %2432 = vmatprep.subr.bf16.mxu0 0
      %2433 = vmatpush1.bf16.msra.mxu0 0
      %2434 = vmatprep.subr.bf16.mxu0 0
      %2435 = vmatpush1.bf16.msra.mxu0 0
      %2436 = vmatprep.subr.bf16.mxu0 0
      %2437 = vmatpush1.bf16.msra.mxu0 0
      %2438 = vmatprep.mubr.bf16.mxu0 0
      %2439 = vmatmul.mubr.bf16.gmra.mrb[0].mxu0 %v2355
      %v2440 = vpop.f32.mrb[0].mxu0
      %v2441 = vadd.f32 %v2352, %v2440
      %v2442 = vpop.f32.mrb[0].mxu0
      %v2443 = vpop.f32.mrb[0].mxu0
      %v2444 = vadd.f32 %v2352, %v2443
      %v2445 = vpop.f32.mrb[0].mxu0
      %2446 = vmatprep.mubr.bf16.mxu0 0
      %2447 = vmatmul.mubr.bf16.gmra.mrb[0].mxu0 %v2358
      %v2448 = vpop.f32.mrb[0].mxu0
      %v2449 = vadd.f32 %v2352, %v2448
      %v2450 = vpop.f32.mrb[0].mxu0
      %v2451 = vpop.f32.mrb[0].mxu0
      %v2452 = vadd.f32 %v2352, %v2451
      %v2453 = vpop.f32.mrb[0].mxu0
      %2454 = vmatprep.mubr.bf16.mxu0 0
      %2455 = vmatmul.mubr.bf16.gmra.mrb[0].mxu0 %v2361
      %v2456 = vpop.f32.mrb[0].mxu0
      %v2457 = vadd.f32 %v2352, %v2456
      %v2458 = vpop.f32.mrb[0].mxu0
      %v2459 = vpop.f32.mrb[0].mxu0
      %v2460 = vadd.f32 %v2352, %v2459
      %v2461 = vpop.f32.mrb[0].mxu0
      %2462 = vmatprep.mubr.bf16.mxu0 0
      %2463 = vmatmul.mubr.bf16.gmra.mrb[0].mxu0 %v2364
      %v2464 = vpop.f32.mrb[0].mxu0
      %v2465 = vadd.f32 %v2352, %v2464
      %v2466 = vpop.f32.mrb[0].mxu0
      %v2467 = vpop.f32.mrb[0].mxu0
      %v2468 = vadd.f32 %v2352, %v2467
      %v2469 = vpop.f32.mrb[0].mxu0
      %2470 = vmatprep.mubr.bf16.mxu0 0
      %2471 = vmatmul.mubr.bf16.gmra.mrb[0].mxu0 %v2367
      %v2472 = vpop.f32.mrb[0].mxu0
      %v2473 = vadd.f32 %v2352, %v2472
      %v2474 = vpop.f32.mrb[0].mxu0
      %v2475 = vpop.f32.mrb[0].mxu0
      %v2476 = vadd.f32 %v2352, %v2475
      %v2477 = vpop.f32.mrb[0].mxu0
      %2478 = vmatprep.mubr.bf16.mxu0 0
      %2479 = vmatmul.mubr.bf16.gmra.mrb[0].mxu0 %v2370
      %v2480 = vpop.f32.mrb[0].mxu0
      %v2481 = vadd.f32 %v2352, %v2480
      %v2482 = vpop.f32.mrb[0].mxu0
      %v2483 = vpop.f32.mrb[0].mxu0
      %v2484 = vadd.f32 %v2352, %v2483
      %v2485 = vpop.f32.mrb[0].mxu0
      %2486 = vmatprep.mubr.bf16.mxu0 0
      %2487 = vmatmul.mubr.bf16.gmra.mrb[0].mxu0 %v2373
      %v2488 = vpop.f32.mrb[0].mxu0
      %v2489 = vadd.f32 %v2352, %v2488
      %v2490 = vpop.f32.mrb[0].mxu0
      %v2491 = vpop.f32.mrb[0].mxu0
      %v2492 = vadd.f32 %v2352, %v2491
      %v2493 = vpop.f32.mrb[0].mxu0
      %2494 = vmatprep.mubr.bf16.mxu0 0
      %2495 = vmatmul.mubr.bf16.gmra.mrb[0].mxu0 %v2376
      %v2496 = vpop.f32.mrb[0].mxu0
      %v2497 = vadd.f32 %v2352, %v2496
      %v2498 = vpop.f32.mrb[0].mxu0
      %v2499 = vpop.f32.mrb[0].mxu0
      %v2500 = vadd.f32 %v2352, %v2499
      %v2501 = vpop.f32.mrb[0].mxu0
      %2502 = vmatprep.mubr.bf16.mxu0 0
      %2503 = vmatmul.mubr.bf16.gmra.mrb[0].mxu0 %v2379
      %v2504 = vpop.f32.mrb[0].mxu0
      %v2505 = vadd.f32 %v2352, %v2504
      %v2506 = vpop.f32.mrb[0].mxu0
      %v2507 = vpop.f32.mrb[0].mxu0
      %v2508 = vadd.f32 %v2352, %v2507
      %v2509 = vpop.f32.mrb[0].mxu0
      %2510 = vmatprep.mubr.bf16.mxu0 0
      %2511 = vmatmul.mubr.bf16.gmra.mrb[0].mxu0 %v2382
      %v2512 = vpop.f32.mrb[0].mxu0
      %v2513 = vadd.f32 %v2352, %v2512
      %v2514 = vpop.f32.mrb[0].mxu0
      %v2515 = vpop.f32.mrb[0].mxu0
      %v2516 = vadd.f32 %v2352, %v2515
      %v2517 = vpop.f32.mrb[0].mxu0
      %2518 = vmatprep.mubr.bf16.mxu0 0
      %2519 = vmatmul.mubr.bf16.gmra.mrb[0].mxu0 %v2385
      %v2520 = vpop.f32.mrb[0].mxu0
      %v2521 = vadd.f32 %v2352, %v2520
      %v2522 = vpop.f32.mrb[0].mxu0
      %v2523 = vpop.f32.mrb[0].mxu0
      %v2524 = vadd.f32 %v2352, %v2523
      %v2525 = vpop.f32.mrb[0].mxu0
      %2526 = vmatprep.mubr.bf16.mxu0 0
      %2527 = vmatmul.mubr.bf16.gmra.mrb[0].mxu0 %v2388
      %v2528 = vpop.f32.mrb[0].mxu0
      %v2529 = vadd.f32 %v2352, %v2528
      %v2530 = vpop.f32.mrb[0].mxu0
      %v2531 = vpop.f32.mrb[0].mxu0
      %v2532 = vadd.f32 %v2352, %v2531
      %v2533 = vpop.f32.mrb[0].mxu0
      %2534 = vmatprep.mubr.bf16.mxu0 0
      %2535 = vmatmul.mubr.bf16.gmra.mrb[0].mxu0 %v2391
      %v2536 = vpop.f32.mrb[0].mxu0
      %v2537 = vadd.f32 %v2352, %v2536
      %v2538 = vpop.f32.mrb[0].mxu0
      %v2539 = vpop.f32.mrb[0].mxu0
      %v2540 = vadd.f32 %v2352, %v2539
      %v2541 = vpop.f32.mrb[0].mxu0
      %2542 = vmatprep.mubr.bf16.mxu0 0
      %2543 = vmatmul.mubr.bf16.gmra.mrb[0].mxu0 %v2394
      %v2544 = vpop.f32.mrb[0].mxu0
      %v2545 = vadd.f32 %v2352, %v2544
      %v2546 = vpop.f32.mrb[0].mxu0
      %v2547 = vpop.f32.mrb[0].mxu0
      %v2548 = vadd.f32 %v2352, %v2547
      %v2549 = vpop.f32.mrb[0].mxu0
      %2550 = vmatprep.mubr.bf16.mxu0 0
      %2551 = vmatmul.mubr.bf16.gmra.mrb[0].mxu0 %v2397
      %v2552 = vpop.f32.mrb[0].mxu0
      %v2553 = vadd.f32 %v2352, %v2552
      %v2554 = vpop.f32.mrb[0].mxu0
      %v2555 = vpop.f32.mrb[0].mxu0
      %v2556 = vadd.f32 %v2352, %v2555
      %v2557 = vpop.f32.mrb[0].mxu0
      %2558 = vmatprep.mubr.bf16.mxu0 0
      %2559 = vmatmul.mubr.bf16.gmra.mrb[0].mxu0 %v2400
      %v2560 = vpop.f32.mrb[0].mxu0
      %v2561 = vadd.f32 %v2352, %v2560
      %v2562 = vpop.f32.mrb[0].mxu0
      %v2563 = vpop.f32.mrb[0].mxu0
      %v2564 = vadd.f32 %v2352, %v2563
      %v2565 = vpop.f32.mrb[0].mxu0
      %2566 = vdwg.mxu0
      %v2567 = vunpack.c.l.bf16 %v280
      %v2568 = vunpack.c.l.bf16 %v281
      %v2569 = vunpack.c.l.bf16 %v282
      %v2570 = vunpack.c.l.bf16 %v283
      %v2571 = vunpack.c.l.bf16 %v284
      %v2572 = vunpack.c.l.bf16 %v285
      %v2573 = vunpack.c.l.bf16 %v286
      %v2574 = vunpack.c.l.bf16 %v287
      %v2575 = vunpack.c.l.bf16 %v288
      %v2576 = vunpack.c.l.bf16 %v289
      %v2577 = vunpack.c.l.bf16 %v290
      %v2578 = vunpack.c.l.bf16 %v291
      %v2579 = vunpack.c.l.bf16 %v292
      %v2580 = vunpack.c.l.bf16 %v293
      %v2581 = vunpack.c.l.bf16 %v294
      %v2582 = vunpack.c.l.bf16 %v295
      %v2583 = vunpack.c.l.bf16 %v296
      %v2584 = vunpack.c.l.bf16 %v297
      %v2585 = vunpack.c.l.bf16 %v298
      %v2586 = vunpack.c.l.bf16 %v299
      %v2587 = vunpack.c.l.bf16 %v300
      %v2588 = vunpack.c.l.bf16 %v301
      %v2589 = vunpack.c.l.bf16 %v302
      %v2590 = vunpack.c.l.bf16 %v303
      %v2591 = vunpack.c.l.bf16 %v304
      %v2592 = vunpack.c.l.bf16 %v305
      %v2593 = vunpack.c.l.bf16 %v306
      %v2594 = vunpack.c.l.bf16 %v307
      %v2595 = vunpack.c.l.bf16 %v308
      %v2596 = vunpack.c.l.bf16 %v309
      %v2597 = vunpack.c.l.bf16 %v310
      %v2598 = vunpack.c.l.bf16 %v311
      %v2599 = vadd.f32 %v2441, %v2567
      %v2600 = vadd.f32 %v2444, %v2568
      %v2601 = vadd.f32 %v2449, %v2569
      %v2602 = vadd.f32 %v2452, %v2570
      %v2603 = vadd.f32 %v2457, %v2571
      %v2604 = vadd.f32 %v2460, %v2572
      %v2605 = vadd.f32 %v2465, %v2573
      %v2606 = vadd.f32 %v2468, %v2574
      %v2607 = vadd.f32 %v2473, %v2575
      %v2608 = vadd.f32 %v2476, %v2576
      %v2609 = vadd.f32 %v2481, %v2577
      %v2610 = vadd.f32 %v2484, %v2578
      %v2611 = vadd.f32 %v2489, %v2579
      %v2612 = vadd.f32 %v2492, %v2580
      %v2613 = vadd.f32 %v2497, %v2581
      %v2614 = vadd.f32 %v2500, %v2582
      %v2615 = vadd.f32 %v2505, %v2583
      %v2616 = vadd.f32 %v2508, %v2584
      %v2617 = vadd.f32 %v2513, %v2585
      %v2618 = vadd.f32 %v2516, %v2586
      %v2619 = vadd.f32 %v2521, %v2587
      %v2620 = vadd.f32 %v2524, %v2588
      %v2621 = vadd.f32 %v2529, %v2589
      %v2622 = vadd.f32 %v2532, %v2590
      %v2623 = vadd.f32 %v2537, %v2591
      %v2624 = vadd.f32 %v2540, %v2592
      %v2625 = vadd.f32 %v2545, %v2593
      %v2626 = vadd.f32 %v2548, %v2594
      %v2627 = vadd.f32 %v2553, %v2595
      %v2628 = vadd.f32 %v2556, %v2596
      %v2629 = vadd.f32 %v2561, %v2597
      %v2630 = vadd.f32 %v2564, %v2598
      %v2631 = vmax.f32 %v2599, 0.0
      %v2632 = vmax.f32 %v2600, 0.0
      %v2633 = vmax.f32 %v2601, 0.0
      %v2634 = vmax.f32 %v2602, 0.0
      %v2635 = vmax.f32 %v2603, 0.0
      %v2636 = vmax.f32 %v2604, 0.0
      %v2637 = vmax.f32 %v2605, 0.0
      %v2638 = vmax.f32 %v2606, 0.0
      %v2639 = vmax.f32 %v2607, 0.0
      %v2640 = vmax.f32 %v2608, 0.0
      %v2641 = vmax.f32 %v2609, 0.0
      %v2642 = vmax.f32 %v2610, 0.0
      %v2643 = vmax.f32 %v2611, 0.0
      %v2644 = vmax.f32 %v2612, 0.0
      %v2645 = vmax.f32 %v2613, 0.0
      %v2646 = vmax.f32 %v2614, 0.0
      %v2647 = vmax.f32 %v2615, 0.0
      %v2648 = vmax.f32 %v2616, 0.0
      %v2649 = vmax.f32 %v2617, 0.0
      %v2650 = vmax.f32 %v2618, 0.0
      %v2651 = vmax.f32 %v2619, 0.0
      %v2652 = vmax.f32 %v2620, 0.0
      %v2653 = vmax.f32 %v2621, 0.0
      %v2654 = vmax.f32 %v2622, 0.0
      %v2655 = vmax.f32 %v2623, 0.0
      %v2656 = vmax.f32 %v2624, 0.0
      %v2657 = vmax.f32 %v2625, 0.0
      %v2658 = vmax.f32 %v2626, 0.0
      %v2659 = vmax.f32 %v2627, 0.0
      %v2660 = vmax.f32 %v2628, 0.0
      %v2661 = vmax.f32 %v2629, 0.0
      %v2662 = vmax.f32 %v2630, 0.0
      %v2663 = vpack.c.bf16 %v2632, %v2631
      %v2664 = vpack.c.bf16 %v2634, %v2633
      %v2665 = vpack.c.bf16 %v2636, %v2635
      %v2666 = vpack.c.bf16 %v2638, %v2637
      %v2667 = vpack.c.bf16 %v2640, %v2639
      %v2668 = vpack.c.bf16 %v2642, %v2641
      %v2669 = vpack.c.bf16 %v2644, %v2643
      %v2670 = vpack.c.bf16 %v2646, %v2645
      %v2671 = vpack.c.bf16 %v2648, %v2647
      %v2672 = vpack.c.bf16 %v2650, %v2649
      %v2673 = vpack.c.bf16 %v2652, %v2651
      %v2674 = vpack.c.bf16 %v2654, %v2653
      %v2675 = vpack.c.bf16 %v2656, %v2655
      %v2676 = vpack.c.bf16 %v2658, %v2657
      %v2677 = vpack.c.bf16 %v2660, %v2659
      %v2678 = vpack.c.bf16 %v2662, %v2661
      %v2695 = vunpack.c.l.b16 %v2663
      %v2696 = vunpack.c.h.b16 %v2663
      %v2697 = vunpack.c.l.b16 %v2664
      %v2698 = vunpack.c.h.b16 %v2664
      %v2699 = vunpack.c.l.b16 %v2665
      %v2700 = vunpack.c.h.b16 %v2665
      %v2701 = vunpack.c.l.b16 %v2666
      %v2702 = vunpack.c.h.b16 %v2666
      %v2703 = vunpack.c.l.b16 %v2667
      %v2704 = vunpack.c.h.b16 %v2667
      %v2705 = vunpack.c.l.b16 %v2668
      %v2706 = vunpack.c.h.b16 %v2668
      %v2707 = vunpack.c.l.b16 %v2669
      %v2708 = vunpack.c.h.b16 %v2669
      %v2709 = vunpack.c.l.b16 %v2670
      %v2710 = vunpack.c.h.b16 %v2670
      %v2711 = vunpack.c.l.b16 %v2671
      %v2712 = vunpack.c.h.b16 %v2671
      %v2713 = vunpack.c.l.b16 %v2672
      %v2714 = vunpack.c.h.b16 %v2672
      %v2715 = vunpack.c.l.b16 %v2673
      %v2716 = vunpack.c.h.b16 %v2673
      %v2717 = vunpack.c.l.b16 %v2674
      %v2718 = vunpack.c.h.b16 %v2674
      %v2719 = vunpack.c.l.b16 %v2675
      %v2720 = vunpack.c.h.b16 %v2675
      %v2721 = vunpack.c.l.b16 %v2676
      %v2722 = vunpack.c.h.b16 %v2676
      %v2723 = vunpack.c.l.b16 %v2677
      %v2724 = vunpack.c.h.b16 %v2677
      %v2725 = vunpack.c.l.b16 %v2678
      %v2726 = vunpack.c.h.b16 %v2678
      %v2727 = vpack.c.b16 %v2695, %v2695
      %v2728 = vpack.c.b16 %v2696, %v2696
      %v2729 = vpack.c.b16 %v2697, %v2697
      %v2730 = vpack.c.b16 %v2698, %v2698
      %v2731 = vpack.c.b16 %v2699, %v2699
      %v2732 = vpack.c.b16 %v2700, %v2700
      %v2733 = vpack.c.b16 %v2701, %v2701
      %v2734 = vpack.c.b16 %v2702, %v2702
      %v2735 = vpack.c.b16 %v2703, %v2703
      %v2736 = vpack.c.b16 %v2704, %v2704
      %v2737 = vpack.c.b16 %v2705, %v2705
      %v2738 = vpack.c.b16 %v2706, %v2706
      %v2739 = vpack.c.b16 %v2707, %v2707
      %v2740 = vpack.c.b16 %v2708, %v2708
      %v2741 = vpack.c.b16 %v2709, %v2709
      %v2742 = vpack.c.b16 %v2710, %v2710
      %v2743 = vpack.c.b16 %v2711, %v2711
      %v2744 = vpack.c.b16 %v2712, %v2712
      %v2745 = vpack.c.b16 %v2713, %v2713
      %v2746 = vpack.c.b16 %v2714, %v2714
      %v2747 = vpack.c.b16 %v2715, %v2715
      %v2748 = vpack.c.b16 %v2716, %v2716
      %v2749 = vpack.c.b16 %v2717, %v2717
      %v2750 = vpack.c.b16 %v2718, %v2718
      %v2751 = vpack.c.b16 %v2719, %v2719
      %v2752 = vpack.c.b16 %v2720, %v2720
      %v2753 = vpack.c.b16 %v2721, %v2721
      %v2754 = vpack.c.b16 %v2722, %v2722
      %v2755 = vpack.c.b16 %v2723, %v2723
      %v2756 = vpack.c.b16 %v2724, %v2724
      %v2757 = vpack.c.b16 %v2725, %v2725
      %v2758 = vpack.c.b16 %v2726, %v2726
      %vm2791 = vcmask 125952
      %2792 = vst.msk [vmem:[%s278] sm:$0xf] %vm2791, %v2727
      %2793 = vst.msk [vmem:[%s278 + $0x4] sm:$0xf] %vm2791, %v2728
      %2794 = vst.msk [vmem:[%s278 + $0x8] sm:$0xf] %vm2791, %v2729
      %2795 = vst.msk [vmem:[%s278 + $0xc] sm:$0xf] %vm2791, %v2730
      %2796 = vst.msk [vmem:[%s278 + $0x10] sm:$0xf] %vm2791, %v2731
      %2797 = vst.msk [vmem:[%s278 + $0x14] sm:$0xf] %vm2791, %v2732
      %2798 = vst.msk [vmem:[%s278 + $0x18] sm:$0xf] %vm2791, %v2733
      %2799 = vst.msk [vmem:[%s278 + $0x1c] sm:$0xf] %vm2791, %v2734
      %2800 = vst.msk [vmem:[%s278 + $0x20] sm:$0xf] %vm2791, %v2735
      %2801 = vst.msk [vmem:[%s278 + $0x24] sm:$0xf] %vm2791, %v2736
      %2802 = vst.msk [vmem:[%s278 + $0x28] sm:$0xf] %vm2791, %v2737
      %2803 = vst.msk [vmem:[%s278 + $0x2c] sm:$0xf] %vm2791, %v2738
      %2804 = vst.msk [vmem:[%s278 + $0x30] sm:$0xf] %vm2791, %v2739
      %2805 = vst.msk [vmem:[%s278 + $0x34] sm:$0xf] %vm2791, %v2740
      %2806 = vst.msk [vmem:[%s278 + $0x38] sm:$0xf] %vm2791, %v2741
      %2807 = vst.msk [vmem:[%s278 + $0x3c] sm:$0xf] %vm2791, %v2742
      %2808 = vst.msk [vmem:[%s278 + $0x40] sm:$0xf] %vm2791, %v2743
      %2809 = vst.msk [vmem:[%s278 + $0x44] sm:$0xf] %vm2791, %v2744
      %2810 = vst.msk [vmem:[%s278 + $0x48] sm:$0xf] %vm2791, %v2745
      %2811 = vst.msk [vmem:[%s278 + $0x4c] sm:$0xf] %vm2791, %v2746
      %2812 = vst.msk [vmem:[%s278 + $0x50] sm:$0xf] %vm2791, %v2747
      %2813 = vst.msk [vmem:[%s278 + $0x54] sm:$0xf] %vm2791, %v2748
      %2814 = vst.msk [vmem:[%s278 + $0x58] sm:$0xf] %vm2791, %v2749
      %2815 = vst.msk [vmem:[%s278 + $0x5c] sm:$0xf] %vm2791, %v2750
      %2816 = vst.msk [vmem:[%s278 + $0x60] sm:$0xf] %vm2791, %v2751
      %2817 = vst.msk [vmem:[%s278 + $0x64] sm:$0xf] %vm2791, %v2752
      %2818 = vst.msk [vmem:[%s278 + $0x68] sm:$0xf] %vm2791, %v2753
      %2819 = vst.msk [vmem:[%s278 + $0x6c] sm:$0xf] %vm2791, %v2754
      %2820 = vst.msk [vmem:[%s278 + $0x70] sm:$0xf] %vm2791, %v2755
      %2821 = vst.msk [vmem:[%s278 + $0x74] sm:$0xf] %vm2791, %v2756
      %2822 = vst.msk [vmem:[%s278 + $0x78] sm:$0xf] %vm2791, %v2757
      %2823 = vst.msk [vmem:[%s278 + $0x7c] sm:$0xf] %vm2791, %v2758
      %p2824 = scmp.lt.s32.totalorder %s18, 1
      %s2825 = scalar_select %p2824, %s18, 1
      %s2826 = smul.addr %s2825, 32
      %s2827 = smul.addr %s2826, 4
      %s2828 = scalar_lea.vmem %s7, %s2827
      // Predicated region
      $region49: #{tpu_custom_call.1} parent=47 // pred_check
        %p2829 = pneg %p188
      $region50: #{tpu_custom_call.1} parent=47 // pred_check_branch
        %2831 = sbr.rel (%p2829) target = $region52
      $region51: #{tpu_custom_call.1} parent=47 // pred_region
        _
      $region52: #{tpu_custom_call.1} parent=47 // pred_fallthru
        _
    $region48: #{tpu_custom_call.1} parent=5 // pred_fallthru
      _
    %p2832 = scmp.le.s32.totalorder 2, %s13
    // Predicated region
    $region53: #{tpu_custom_call.1} parent=5 // pred_check
      %p2833 = pneg %p2832
    $region54: #{tpu_custom_call.1} parent=5 // pred_check_branch
      %2835 = sbr.rel (%p2833) target = $region56
    $region55: #{tpu_custom_call.1} parent=5 // pred_region
      %s2836 = ssub.s32 %s13, 2
      // Predicated region
      $region57: #{tpu_custom_call.1} parent=55 // pred_check
        %p2837 = pneg %p194
      $region58: #{tpu_custom_call.1} parent=55 // pred_check_branch
        %2839 = sbr.rel (%p2837) target = $region60
      $region59: #{tpu_custom_call.1} parent=55 // pred_region
        %p2840 = scmp.lt.s32.totalorder %s19, 1
        %s2841 = scalar_select %p2840, %s19, 1
        %s2842 = smul.addr %s2841, 32
        %s2843 = smul.addr %s2842, 4
        %s2844 = scalar_lea.vmem %s7, %s2843
      $region60: #{tpu_custom_call.1} parent=55 // pred_fallthru
        _
    $region56: #{tpu_custom_call.1} parent=5 // pred_fallthru
      _
  $region6: #{tpu_custom_call.1} parent=0 // loop_footer
    %s17 = sadd.s32 1, %s13
  $region7: #{tpu_custom_call.1} parent=0 // loop_footer_branch
    %12 = sbr.rel target = $region3
  $region8: #{tpu_custom_call.1} parent=0 // loop_exit
    _

</llo_original>
